<compile_context>
chip_gen: v7x
topology: tpu7x:2x2x1
jax: 0.10.0
libtpu: 0.0.40
codegen_flags: <defaults>
</compile_context>

<pallas_src>
import functools

import jax
import jax.numpy as jnp
from jax.experimental import pallas as pl
from jax.experimental.pallas import tpu as pltpu

# ---------------- static configuration ----------------
N = 16            # number of nodes per graph (board_size)
IN_DIM = 4        # input_dim
EMB = 32          # embedding_dim == num_channels
CH = 32           # num_channels == readout_dim
RO_DIM = 32
NUM_LAYERS = 2
ACTION = 16       # action_size
LN_EPS = 1e-5     # nn.LayerNorm default eps

# group tiling: G graphs per grid step -> RG = G*N = 128 rows, one full
# 128x128 MXU pass per aggregation on v5e and unmasked (8,128) tiles on all
# generations.  (v6e/v7x could use G=16 -> 256 rows; 128 keeps the example
# small and still removes the launch-overhead-bound regime.)
G = 8
RG = G * N                 # 128 rows per group
HEAD_W = 128               # lane-dense fused policy||value||pad head width

assert EMB == CH == RO_DIM
assert ACTION + 1 <= HEAD_W
assert RG % 8 == 0 and RG % 128 == 0

# packed-weight slab layout: W[k] is (CH, CH)
W_EMB = 0                       # rows 0..IN_DIM-1 hold the embedding weight
W_CONV = 1                      # NUM_LAYERS conv weights
W_RO = 1 + NUM_LAYERS           # readout weight
NUM_W = 2 + NUM_LAYERS

# packed-bias slab layout: BV[k] is (CH,)
BV_EMB = 0
BV_CONV = 1
BV_GAMMA = 1 + NUM_LAYERS
BV_BETA = 1 + 2 * NUM_LAYERS
BV_RO = 1 + 3 * NUM_LAYERS
NUM_BV = 2 + 3 * NUM_LAYERS


def tspn_kernel(nf_ref, adj_ref, pool_ref, w_ref, bv_ref, hw_ref, hb_ref, out_ref):
    nf = nf_ref[...]           # (RG, CH)  zero-padded node features for G graphs
    nadj = adj_ref[...]        # (RG, RG)  degree-normalized block-diag adjacency

    # embedding: Linear(IN_DIM -> EMB). nf is zero-padded beyond IN_DIM and the
    # corresponding rows of w_ref[W_EMB] are zero, so the padded matmul is exact.
    x = (jnp.dot(nf, w_ref[W_EMB], preferred_element_type=jnp.float32)
         + bv_ref[BV_EMB:BV_EMB + 1, :])
    initial = x                # skip-connection source (emb == channels)

    # graph convolution stack (static unroll, NUM_LAYERS is small)
    for i in range(NUM_LAYERS):
        # block-diag aggregation == per-graph bmm, done as one 128-wide MXU matmul
        agg = jnp.dot(nadj, x, preferred_element_type=jnp.float32)
        h = jnp.dot(agg, w_ref[W_CONV + i], preferred_element_type=jnp.float32)
        h = h + bv_ref[BV_CONV + i:BV_CONV + i + 1, :]
        # LayerNorm over channels (biased variance, eps = 1e-5)
        mu = jnp.mean(h, axis=-1, keepdims=True)
        d = h - mu
        var = jnp.mean(d * d, axis=-1, keepdims=True)
        h = d * jax.lax.rsqrt(var + LN_EPS)
        h = (h * bv_ref[BV_GAMMA + i:BV_GAMMA + i + 1, :]
             + bv_ref[BV_BETA + i:BV_BETA + i + 1, :])
        # skip connection + ReLU (dropout is identity in eval mode)
        x = jnp.maximum(h + initial, 0.0)

    # global mean pool per graph via the precomputed (G, RG) pooling matrix
    pooled = jnp.dot(pool_ref[...], x, preferred_element_type=jnp.float32)   # (G, CH)

    # readout: Linear(CH -> RO_DIM) + ReLU
    feat = (jnp.dot(pooled, w_ref[W_RO], preferred_element_type=jnp.float32)
            + bv_ref[BV_RO:BV_RO + 1, :])
    feat = jnp.maximum(feat, 0.0)

    # fused policy + value head -> one lane-dense (G, 128) unmasked store
    out_ref[...] = (jnp.dot(feat, hw_ref[...], preferred_element_type=jnp.float32)
                    + hb_ref[...])


def pack_params(params):
    """One-time (init) packing of the 12 small parameter arrays into slabs."""
    (w_emb, b_emb, w_conv, b_conv, gamma, beta,
     w_ro, b_ro, w_pi, b_pi, w_v, b_v) = params

    W = jnp.zeros((NUM_W, CH, CH), jnp.float32)
    W = W.at[W_EMB, :IN_DIM, :].set(w_emb)                  # zero rows >= IN_DIM
    W = W.at[W_CONV:W_CONV + NUM_LAYERS].set(w_conv)
    W = W.at[W_RO].set(w_ro)

    BV = jnp.zeros((NUM_BV, CH), jnp.float32)
    BV = BV.at[BV_EMB].set(b_emb.reshape(-1))
    BV = BV.at[BV_CONV:BV_CONV + NUM_LAYERS].set(b_conv)
    BV = BV.at[BV_GAMMA:BV_GAMMA + NUM_LAYERS].set(gamma)
    BV = BV.at[BV_BETA:BV_BETA + NUM_LAYERS].set(beta)
    BV = BV.at[BV_RO].set(b_ro.reshape(-1))

    # fused policy||value head, zero-padded to a 128-lane slab
    HW = jnp.zeros((CH, HEAD_W), jnp.float32)
    HW = HW.at[:, :ACTION].set(w_pi)
    HW = HW.at[:, ACTION:ACTION + 1].set(w_v)
    HB = jnp.zeros((1, HEAD_W), jnp.float32)
    HB = HB.at[0, :ACTION].set(b_pi.reshape(-1))
    HB = HB.at[0, ACTION].set(b_v.reshape(-1)[0])

    # static mean-pool matrix: pool[i, i*N:(i+1)*N] = 1/N
    POOL = jnp.kron(jnp.eye(G, dtype=jnp.float32),
                    jnp.full((1, N), 1.0 / N, jnp.float32))   # (G, RG)
    return W, BV, HW, HB, POOL


@jax.jit
def tspn_forward(node_features, adjacency, packed):
    """Full TSPNNet forward: group-tiled grid, one group of G graphs per step."""
    W, BV, HW, HB, POOL = packed
    B = node_features.shape[0]
    NG = pl.cdiv(B, G)          # number of groups (grid size)
    BP = NG * G                 # padded batch

    # degree normalization hoisted out of the kernel (pure input preprocessing)
    deg = adjacency.sum(-1, keepdims=True) + 1e-6
    nadj = (adjacency / deg).astype(jnp.float32)

    # lane-dense padded node features: (NG*RG, CH)
    nf = node_features.astype(jnp.float32)
    nf = jnp.pad(nf, ((0, BP - B), (0, 0), (0, CH - IN_DIM)))
    nf = nf.reshape(NG * RG, CH)

    # per-group block-diagonal normalized adjacency: (NG*RG, RG)
    nadj = jnp.pad(nadj, ((0, BP - B), (0, 0), (0, 0))).reshape(NG, G, N, N)
    bd = jnp.einsum('ik,gkab->giakb', jnp.eye(G, dtype=jnp.float32), nadj)
    bd = bd.reshape(NG * RG, RG)

    # advisory cost estimate
    per_group_flops = (2 * RG * RG * CH * NUM_LAYERS            # aggregations
                       + 2 * RG * CH * CH * (1 + NUM_LAYERS)    # emb + conv weights
                       + 2 * G * RG * CH                         # pooling
                       + 2 * G * CH * CH + 2 * G * CH * HEAD_W)  # readout + head
    bytes_accessed = 4 * (nf.size + bd.size + W.size + BV.size + HW.size
                          + HB.size + POOL.size + NG * G * HEAD_W)
    cost = pl.CostEstimate(flops=NG * per_group_flops,
                           transcendentals=NG * RG * NUM_LAYERS,
                           bytes_accessed=bytes_accessed)

    out = pl.pallas_call(
        tspn_kernel,
        out_shape=jax.ShapeDtypeStruct((NG * G, HEAD_W), jnp.float32),
        grid_spec=pltpu.PrefetchScalarGridSpec(
            num_scalar_prefetch=0,
            grid=(NG,),
            in_specs=[
                pl.BlockSpec((RG, CH), lambda g: (g, 0)),           # node features
                pl.BlockSpec((RG, RG), lambda g: (g, 0)),           # norm block-diag adj
                pl.BlockSpec((G, RG), lambda g: (0, 0)),            # mean-pool matrix
                pl.BlockSpec((NUM_W, CH, CH), lambda g: (0, 0, 0)),  # packed weights
                pl.BlockSpec((NUM_BV, CH), lambda g: (0, 0)),       # packed biases
                pl.BlockSpec((CH, HEAD_W), lambda g: (0, 0)),       # fused head weight
                pl.BlockSpec((1, HEAD_W), lambda g: (0, 0)),        # fused head bias
            ],
            out_specs=pl.BlockSpec((G, HEAD_W), lambda g: (g, 0)),
        ),
        compiler_params=pltpu.CompilerParams(
            dimension_semantics=("parallel",),          # groups are independent
            vmem_limit_bytes=8 * 1024 * 1024),
        cost_estimate=cost,
    )(nf, bd, POOL, W, BV, HW, HB)

    pi = out[:B, :ACTION]
    v = out[:B, ACTION]
    return pi, v


def make_params(key):
    """Deterministic synthetic parameters (weights stored as (in, out))."""
    ks = jax.random.split(key, 8)
    s = 0.1
    w_emb = s * jax.random.normal(ks[0], (IN_DIM, EMB), jnp.float32)
    b_emb = jnp.zeros((1, EMB), jnp.float32)
    w_conv = s * jax.random.normal(ks[1], (NUM_LAYERS, EMB, CH), jnp.float32)
    b_conv = jnp.zeros((NUM_LAYERS, CH), jnp.float32)
    gamma = jnp.ones((NUM_LAYERS, CH), jnp.float32)
    beta = jnp.zeros((NUM_LAYERS, CH), jnp.float32)
    w_ro = s * jax.random.normal(ks[2], (CH, RO_DIM), jnp.float32)
    b_ro = jnp.zeros((1, RO_DIM), jnp.float32)
    w_pi = s * jax.random.normal(ks[3], (RO_DIM, ACTION), jnp.float32)
    b_pi = jnp.zeros((1, ACTION), jnp.float32)
    w_v = s * jax.random.normal(ks[4], (RO_DIM, 1), jnp.float32)
    b_v = jnp.zeros((1, 1), jnp.float32)
    return (w_emb, b_emb, w_conv, b_conv, gamma, beta,
            w_ro, b_ro, w_pi, b_pi, w_v, b_v)


def tspn_forward_ref(node_features, adjacency, params):
    """Pure-JAX reference mirroring the PyTorch forward (eval mode)."""
    (w_emb, b_emb, w_conv, b_conv, gamma, beta,
     w_ro, b_ro, w_pi, b_pi, w_v, b_v) = params
    x = node_features @ w_emb + b_emb
    initial = x
    deg = adjacency.sum(-1, keepdims=True) + 1e-6
    norm_adj = adjacency / deg
    for i in range(NUM_LAYERS):
        agg = jnp.einsum('bij,bjc->bic', norm_adj, x)
        out = agg @ w_conv[i] + b_conv[i]
        mu = out.mean(-1, keepdims=True)
        var = ((out - mu) ** 2).mean(-1, keepdims=True)
        out = (out - mu) / jnp.sqrt(var + LN_EPS) * gamma[i] + beta[i]
        x = jnp.maximum(out + initial, 0.0)
    pooled = x.mean(axis=1)
    feat = jnp.maximum(pooled @ w_ro + b_ro, 0.0)
    pi = feat @ w_pi + b_pi
    v = (feat @ w_v + b_v)[:, 0]
    return pi, v


if __name__ == "__main__":
    key = jax.random.PRNGKey(0)
    k_nf, k_adj, k_par = jax.random.split(key, 3)

    B = 16   # 16 graphs -> 2 groups of G=8 (exercises the group grid axis)
    node_features = jax.random.normal(k_nf, (B, N, IN_DIM), jnp.float32)
    # symmetric non-negative adjacency with self-loops
    a = jax.random.uniform(k_adj, (B, N, N), jnp.float32)
    adjacency = (a + jnp.swapaxes(a, 1, 2)) * 0.5 + jnp.eye(N)[None]

    params = make_params(k_par)
    packed = pack_params(params)          # init-time packing (not per call)

    pi, v = tspn_forward(node_features, adjacency, packed)
    jax.block_until_ready((pi, v))

    pi_ref, v_ref = tspn_forward_ref(node_features, adjacency, params)
    assert jnp.allclose(pi, pi_ref, atol=1e-4, rtol=1e-4)
    assert jnp.allclose(v, v_ref, atol=1e-4, rtol=1e-4)

    print("KERNEL_OK")
</pallas_src>

<mosaic_0001>
module attributes {stable_mosaic.version = 11 : i64} {
  func.func @tspn_kernel(%arg0: i32, %arg1: memref<128x32xf32, #tpu.memory_space<vmem>>, %arg2: memref<128x128xf32, #tpu.memory_space<vmem>>, %arg3: memref<8x128xf32, #tpu.memory_space<vmem>>, %arg4: memref<4x32x32xf32, #tpu.memory_space<vmem>>, %arg5: memref<8x32xf32, #tpu.memory_space<vmem>>, %arg6: memref<32x128xf32, #tpu.memory_space<vmem>>, %arg7: memref<1x128xf32, #tpu.memory_space<vmem>>, %arg8: memref<8x128xf32, #tpu.memory_space<vmem>>) attributes {dimension_semantics = [#tpu.dimension_semantics<parallel>], iteration_bounds = array<i64: 2>, scalar_prefetch = 0 : i64, scratch_operands = 0 : i64, tpu.core_type = #tpu.core_type<tc>, window_params = [{transform_indices = @transform_0, window_bounds = array<i64: 128, 32>}, {transform_indices = @transform_1, window_bounds = array<i64: 128, 128>}, {pipeline_mode = #tpu.pipeline_mode<synchronous>, transform_indices = @transform_2, window_bounds = array<i64: 8, 128>}, {pipeline_mode = #tpu.pipeline_mode<synchronous>, transform_indices = @transform_3, window_bounds = array<i64: 4, 32, 32>}, {pipeline_mode = #tpu.pipeline_mode<synchronous>, transform_indices = @transform_4, window_bounds = array<i64: 8, 32>}, {pipeline_mode = #tpu.pipeline_mode<synchronous>, transform_indices = @transform_5, window_bounds = array<i64: 32, 128>}, {pipeline_mode = #tpu.pipeline_mode<synchronous>, transform_indices = @transform_6, window_bounds = array<i64: 1, 128>}, {transform_indices = @transform_7, window_bounds = array<i64: 8, 128>}]} {
    %c0 = arith.constant 0 : index
    %c0_0 = arith.constant 0 : index
    %0 = vector.load %arg1[%c0, %c0_0] : memref<128x32xf32, #tpu.memory_space<vmem>>, vector<128x32xf32>
    %c0_1 = arith.constant 0 : index
    %c0_2 = arith.constant 0 : index
    %1 = vector.load %arg2[%c0_1, %c0_2] : memref<128x128xf32, #tpu.memory_space<vmem>>, vector<128x128xf32>
    %c0_3 = arith.constant 0 : index
    %c0_4 = arith.constant 0 : index
    %c0_5 = arith.constant 0 : index
    %2 = vector.load %arg4[%c0_3, %c0_4, %c0_5] : memref<4x32x32xf32, #tpu.memory_space<vmem>>, vector<1x32x32xf32>
    %3 = vector.shape_cast %2 : vector<1x32x32xf32> to vector<32x32xf32>
    %cst = arith.constant dense<0.000000e+00> : vector<128x32xf32>
    %4 = tpu.matmul %0, %3, %cst {dimension_numbers = #tpu.dot_dimension_numbers<[1], [0], [0], [1], [0, 0, 1, 1], [], []>} : vector<128x32xf32>, vector<32x32xf32>, vector<128x32xf32> -> vector<128x32xf32>
    %c0_6 = arith.constant 0 : index
    %c0_7 = arith.constant 0 : index
    %5 = vector.load %arg5[%c0_6, %c0_7] : memref<8x32xf32, #tpu.memory_space<vmem>>, vector<1x32xf32>
    %6 = vector.broadcast %5 : vector<1x32xf32> to vector<128x32xf32>
    %7 = arith.addf %4, %6 : vector<128x32xf32>
    %cst_8 = arith.constant dense<0.000000e+00> : vector<128x32xf32>
    %8 = tpu.matmul %1, %7, %cst_8 {dimension_numbers = #tpu.dot_dimension_numbers<[1], [0], [0], [1], [0, 0, 1, 1], [], []>} : vector<128x128xf32>, vector<128x32xf32>, vector<128x32xf32> -> vector<128x32xf32>
    %c1 = arith.constant 1 : index
    %c0_9 = arith.constant 0 : index
    %c0_10 = arith.constant 0 : index
    %9 = vector.load %arg4[%c1, %c0_9, %c0_10] : memref<4x32x32xf32, #tpu.memory_space<vmem>>, vector<1x32x32xf32>
    %10 = vector.shape_cast %9 : vector<1x32x32xf32> to vector<32x32xf32>
    %cst_11 = arith.constant dense<0.000000e+00> : vector<128x32xf32>
    %11 = tpu.matmul %8, %10, %cst_11 {dimension_numbers = #tpu.dot_dimension_numbers<[1], [0], [0], [1], [0, 0, 1, 1], [], []>} : vector<128x32xf32>, vector<32x32xf32>, vector<128x32xf32> -> vector<128x32xf32>
    %c1_12 = arith.constant 1 : index
    %c0_13 = arith.constant 0 : index
    %12 = vector.load %arg5[%c1_12, %c0_13] : memref<8x32xf32, #tpu.memory_space<vmem>>, vector<1x32xf32>
    %13 = vector.broadcast %12 : vector<1x32xf32> to vector<128x32xf32>
    %14 = arith.addf %11, %13 : vector<128x32xf32>
    %cst_14 = arith.constant dense<0.000000e+00> : vector<128xf32>
    %15 = vector.multi_reduction <add>, %14, %cst_14 [1] : vector<128x32xf32> to vector<128xf32>
    %16 = vector.shape_cast %15 : vector<128xf32> to vector<128x1xf32>
    %cst_15 = arith.constant 3.200000e+01 : f32
    %17 = vector.broadcast %cst_15 : f32 to vector<128x1xf32>
    %18 = arith.divf %16, %17 : vector<128x1xf32>
    %19 = vector.broadcast %18 : vector<128x1xf32> to vector<128x32xf32>
    %20 = arith.subf %14, %19 : vector<128x32xf32>
    %21 = arith.mulf %20, %20 : vector<128x32xf32>
    %cst_16 = arith.constant dense<0.000000e+00> : vector<128xf32>
    %22 = vector.multi_reduction <add>, %21, %cst_16 [1] : vector<128x32xf32> to vector<128xf32>
    %23 = vector.shape_cast %22 : vector<128xf32> to vector<128x1xf32>
    %cst_17 = arith.constant 3.200000e+01 : f32
    %24 = vector.broadcast %cst_17 : f32 to vector<128x1xf32>
    %25 = arith.divf %23, %24 : vector<128x1xf32>
    %cst_18 = arith.constant 9.99999974E-6 : f32
    %26 = vector.broadcast %cst_18 : f32 to vector<128x1xf32>
    %27 = arith.addf %25, %26 : vector<128x1xf32>
    %28 = math.rsqrt %27 : vector<128x1xf32>
    %29 = vector.broadcast %28 : vector<128x1xf32> to vector<128x32xf32>
    %30 = arith.mulf %20, %29 : vector<128x32xf32>
    %c3 = arith.constant 3 : index
    %c0_19 = arith.constant 0 : index
    %31 = vector.load %arg5[%c3, %c0_19] : memref<8x32xf32, #tpu.memory_space<vmem>>, vector<1x32xf32>
    %32 = vector.broadcast %31 : vector<1x32xf32> to vector<128x32xf32>
    %33 = arith.mulf %30, %32 : vector<128x32xf32>
    %c5 = arith.constant 5 : index
    %c0_20 = arith.constant 0 : index
    %34 = vector.load %arg5[%c5, %c0_20] : memref<8x32xf32, #tpu.memory_space<vmem>>, vector<1x32xf32>
    %35 = vector.broadcast %34 : vector<1x32xf32> to vector<128x32xf32>
    %36 = arith.addf %33, %35 : vector<128x32xf32>
    %37 = arith.addf %36, %7 : vector<128x32xf32>
    %cst_21 = arith.constant 0.000000e+00 : f32
    %38 = vector.broadcast %cst_21 : f32 to vector<128x32xf32>
    %39 = arith.maximumf %37, %38 : vector<128x32xf32>
    %cst_22 = arith.constant dense<0.000000e+00> : vector<128x32xf32>
    %40 = tpu.matmul %1, %39, %cst_22 {dimension_numbers = #tpu.dot_dimension_numbers<[1], [0], [0], [1], [0, 0, 1, 1], [], []>} : vector<128x128xf32>, vector<128x32xf32>, vector<128x32xf32> -> vector<128x32xf32>
    %c2 = arith.constant 2 : index
    %c0_23 = arith.constant 0 : index
    %c0_24 = arith.constant 0 : index
    %41 = vector.load %arg4[%c2, %c0_23, %c0_24] : memref<4x32x32xf32, #tpu.memory_space<vmem>>, vector<1x32x32xf32>
    %42 = vector.shape_cast %41 : vector<1x32x32xf32> to vector<32x32xf32>
    %cst_25 = arith.constant dense<0.000000e+00> : vector<128x32xf32>
    %43 = tpu.matmul %40, %42, %cst_25 {dimension_numbers = #tpu.dot_dimension_numbers<[1], [0], [0], [1], [0, 0, 1, 1], [], []>} : vector<128x32xf32>, vector<32x32xf32>, vector<128x32xf32> -> vector<128x32xf32>
    %c2_26 = arith.constant 2 : index
    %c0_27 = arith.constant 0 : index
    %44 = vector.load %arg5[%c2_26, %c0_27] : memref<8x32xf32, #tpu.memory_space<vmem>>, vector<1x32xf32>
    %45 = vector.broadcast %44 : vector<1x32xf32> to vector<128x32xf32>
    %46 = arith.addf %43, %45 : vector<128x32xf32>
    %cst_28 = arith.constant dense<0.000000e+00> : vector<128xf32>
    %47 = vector.multi_reduction <add>, %46, %cst_28 [1] : vector<128x32xf32> to vector<128xf32>
    %48 = vector.shape_cast %47 : vector<128xf32> to vector<128x1xf32>
    %cst_29 = arith.constant 3.200000e+01 : f32
    %49 = vector.broadcast %cst_29 : f32 to vector<128x1xf32>
    %50 = arith.divf %48, %49 : vector<128x1xf32>
    %51 = vector.broadcast %50 : vector<128x1xf32> to vector<128x32xf32>
    %52 = arith.subf %46, %51 : vector<128x32xf32>
    %53 = arith.mulf %52, %52 : vector<128x32xf32>
    %cst_30 = arith.constant dense<0.000000e+00> : vector<128xf32>
    %54 = vector.multi_reduction <add>, %53, %cst_30 [1] : vector<128x32xf32> to vector<128xf32>
    %55 = vector.shape_cast %54 : vector<128xf32> to vector<128x1xf32>
    %cst_31 = arith.constant 3.200000e+01 : f32
    %56 = vector.broadcast %cst_31 : f32 to vector<128x1xf32>
    %57 = arith.divf %55, %56 : vector<128x1xf32>
    %cst_32 = arith.constant 9.99999974E-6 : f32
    %58 = vector.broadcast %cst_32 : f32 to vector<128x1xf32>
    %59 = arith.addf %57, %58 : vector<128x1xf32>
    %60 = math.rsqrt %59 : vector<128x1xf32>
    %61 = vector.broadcast %60 : vector<128x1xf32> to vector<128x32xf32>
    %62 = arith.mulf %52, %61 : vector<128x32xf32>
    %c4 = arith.constant 4 : index
    %c0_33 = arith.constant 0 : index
    %63 = vector.load %arg5[%c4, %c0_33] : memref<8x32xf32, #tpu.memory_space<vmem>>, vector<1x32xf32>
    %64 = vector.broadcast %63 : vector<1x32xf32> to vector<128x32xf32>
    %65 = arith.mulf %62, %64 : vector<128x32xf32>
    %c6 = arith.constant 6 : index
    %c0_34 = arith.constant 0 : index
    %66 = vector.load %arg5[%c6, %c0_34] : memref<8x32xf32, #tpu.memory_space<vmem>>, vector<1x32xf32>
    %67 = vector.broadcast %66 : vector<1x32xf32> to vector<128x32xf32>
    %68 = arith.addf %65, %67 : vector<128x32xf32>
    %69 = arith.addf %68, %7 : vector<128x32xf32>
    %cst_35 = arith.constant 0.000000e+00 : f32
    %70 = vector.broadcast %cst_35 : f32 to vector<128x32xf32>
    %71 = arith.maximumf %69, %70 : vector<128x32xf32>
    %c0_36 = arith.constant 0 : index
    %c0_37 = arith.constant 0 : index
    %72 = vector.load %arg3[%c0_36, %c0_37] : memref<8x128xf32, #tpu.memory_space<vmem>>, vector<8x128xf32>
    %cst_38 = arith.constant dense<0.000000e+00> : vector<8x32xf32>
    %73 = tpu.matmul %72, %71, %cst_38 {dimension_numbers = #tpu.dot_dimension_numbers<[1], [0], [0], [1], [0, 0, 1, 1], [], []>} : vector<8x128xf32>, vector<128x32xf32>, vector<8x32xf32> -> vector<8x32xf32>
    %c3_39 = arith.constant 3 : index
    %c0_40 = arith.constant 0 : index
    %c0_41 = arith.constant 0 : index
    %74 = vector.load %arg4[%c3_39, %c0_40, %c0_41] : memref<4x32x32xf32, #tpu.memory_space<vmem>>, vector<1x32x32xf32>
    %75 = vector.shape_cast %74 : vector<1x32x32xf32> to vector<32x32xf32>
    %cst_42 = arith.constant dense<0.000000e+00> : vector<8x32xf32>
    %76 = tpu.matmul %73, %75, %cst_42 {dimension_numbers = #tpu.dot_dimension_numbers<[1], [0], [0], [1], [0, 0, 1, 1], [], []>} : vector<8x32xf32>, vector<32x32xf32>, vector<8x32xf32> -> vector<8x32xf32>
    %c7 = arith.constant 7 : index
    %c0_43 = arith.constant 0 : index
    %77 = vector.load %arg5[%c7, %c0_43] : memref<8x32xf32, #tpu.memory_space<vmem>>, vector<1x32xf32>
    %78 = vector.broadcast %77 : vector<1x32xf32> to vector<8x32xf32>
    %79 = arith.addf %76, %78 : vector<8x32xf32>
    %cst_44 = arith.constant 0.000000e+00 : f32
    %80 = vector.broadcast %cst_44 : f32 to vector<8x32xf32>
    %81 = arith.maximumf %79, %80 : vector<8x32xf32>
    %c0_45 = arith.constant 0 : index
    %c0_46 = arith.constant 0 : index
    %82 = vector.load %arg6[%c0_45, %c0_46] : memref<32x128xf32, #tpu.memory_space<vmem>>, vector<32x128xf32>
    %cst_47 = arith.constant dense<0.000000e+00> : vector<8x128xf32>
    %83 = tpu.matmul %81, %82, %cst_47 {dimension_numbers = #tpu.dot_dimension_numbers<[1], [0], [0], [1], [0, 0, 1, 1], [], []>} : vector<8x32xf32>, vector<32x128xf32>, vector<8x128xf32> -> vector<8x128xf32>
    %c0_48 = arith.constant 0 : index
    %c0_49 = arith.constant 0 : index
    %84 = vector.load %arg7[%c0_48, %c0_49] : memref<1x128xf32, #tpu.memory_space<vmem>>, vector<1x128xf32>
    %85 = vector.broadcast %84 : vector<1x128xf32> to vector<8x128xf32>
    %86 = arith.addf %83, %85 : vector<8x128xf32>
    %c0_50 = arith.constant 0 : index
    %c0_51 = arith.constant 0 : index
    %87 = vector.load %arg8[%c0_50, %c0_51] : memref<8x128xf32, #tpu.memory_space<vmem>>, vector<8x128xf32>
    tpu.vector_store %arg8[%c0_50, %c0_51], %86 {strides = array<i32>} : memref<8x128xf32, #tpu.memory_space<vmem>>, vector<8x128xf32>,
    return
  }
  func.func @transform_0(%arg0: i32) -> (i32, i32) {
    %c0_i32 = arith.constant 0 : i32
    %c0_i32_0 = arith.constant 0 : i32
    return %arg0, %c0_i32 : i32, i32
  }
  func.func @transform_1(%arg0: i32) -> (i32, i32) {
    %c0_i32 = arith.constant 0 : i32
    %c0_i32_0 = arith.constant 0 : i32
    return %arg0, %c0_i32 : i32, i32
  }
  func.func @transform_2(%arg0: i32) -> (i32, i32) {
    %c0_i32 = arith.constant 0 : i32
    %c0_i32_0 = arith.constant 0 : i32
    %c0_i32_1 = arith.constant 0 : i32
    return %c0_i32, %c0_i32_0 : i32, i32
  }
  func.func @transform_3(%arg0: i32) -> (i32, i32, i32) {
    %c0_i32 = arith.constant 0 : i32
    %c0_i32_0 = arith.constant 0 : i32
    %c0_i32_1 = arith.constant 0 : i32
    %c0_i32_2 = arith.constant 0 : i32
    return %c0_i32, %c0_i32_0, %c0_i32_1 : i32, i32, i32
  }
  func.func @transform_4(%arg0: i32) -> (i32, i32) {
    %c0_i32 = arith.constant 0 : i32
    %c0_i32_0 = arith.constant 0 : i32
    %c0_i32_1 = arith.constant 0 : i32
    return %c0_i32, %c0_i32_0 : i32, i32
  }
  func.func @transform_5(%arg0: i32) -> (i32, i32) {
    %c0_i32 = arith.constant 0 : i32
    %c0_i32_0 = arith.constant 0 : i32
    %c0_i32_1 = arith.constant 0 : i32
    return %c0_i32, %c0_i32_0 : i32, i32
  }
  func.func @transform_6(%arg0: i32) -> (i32, i32) {
    %c0_i32 = arith.constant 0 : i32
    %c0_i32_0 = arith.constant 0 : i32
    %c0_i32_1 = arith.constant 0 : i32
    return %c0_i32, %c0_i32_0 : i32, i32
  }
  func.func @transform_7(%arg0: i32) -> (i32, i32) {
    %c0_i32 = arith.constant 0 : i32
    %c0_i32_0 = arith.constant 0 : i32
    return %arg0, %c0_i32 : i32, i32
  }
}

</mosaic_0001>

<llo_original>
// kernel: tspn_forward.1
$region0: #{tspn_forward.1}
  #allocation0 [shape = 'u32[]', space=smem, size = 0x4, offset = 0x4, fixed_abs, tag = 'smem constant byte address 0x4 - core index']
  #allocation1 [shape = 'u32[144,128]{1,0:T(1,128)}', space=vmem, size = 0x12000, scoped, tag = 'internal scratch']
  %s0 = inlined_call_operand.vmem [shape: f32[256,32], index: 0, kind: input, shape index: {}]
  %s1 = inlined_call_operand.vmem [shape: f32[256,128], index: 1, kind: input, shape index: {}]
  %s2 = inlined_call_operand.vmem [shape: f32[8,128], index: 2, kind: input, shape index: {}]
  %s3 = inlined_call_operand.vmem [shape: f32[4,32,32], index: 3, kind: input, shape index: {}]
  %s4 = inlined_call_operand.vmem [shape: f32[8,32], index: 4, kind: input, shape index: {}]
  %s5 = inlined_call_operand.vmem [shape: f32[32,128], index: 5, kind: input, shape index: {}]
  %s6 = inlined_call_operand.vmem [shape: f32[1,128], index: 6, kind: input, shape index: {}]
  %s7 = inlined_call_operand.vmem [shape: f32[16,128], index: 7, kind: output, shape index: {}]
  %s8 = sld [smem:[#allocation0]]
  $region61: #{tspn_forward.1} parent=0
    _
  %s10 = ssub.s32 1, %s8
  %s11 = scalar_select 0, %s10, %s8
  loop: start=0, step=1, limit=4
  $region2: #{tspn_forward.1} parent=0 // loop_pre_header
    _
  $region3: #{tspn_forward.1} parent=0 // loop_header
    %s13 = sphi 0, %s17
    %p14 = scmp.ge.s32.totalorder %s13, 4
    %s23 = sphi 0, %s25
    %s26 = sphi 0, %s23
    %s27 = sphi 0, %s26
    %s43 = sphi 0, %s27
    %s49 = sphi 0, %s51
    %s52 = sphi 0, %s49
    %s53 = sphi 0, %s52
    %s69 = sphi 0, %s53
    %s73 = sphi 0, %s73
    %s75 = sphi 0, %s73
    %s76 = sphi 0, %s75
    %s90 = sphi 0, %s76
    %s94 = sphi 0, %s94
    %s96 = sphi 0, %s94
    %s97 = sphi 0, %s96
    %s111 = sphi 0, %s97
    %s115 = sphi 0, %s115
    %s117 = sphi 0, %s115
    %s118 = sphi 0, %s117
    %s132 = sphi 0, %s118
    %s136 = sphi 0, %s136
    %s138 = sphi 0, %s136
    %s139 = sphi 0, %s138
    %s153 = sphi 0, %s139
    %s157 = sphi 0, %s157
    %s159 = sphi 0, %s157
    %s160 = sphi 0, %s159
    %s174 = sphi 0, %s160
    %s180 = sphi 0, %s182
    %s183 = sphi 0, %s180
    %s184 = sphi 0, %s183
    %s200 = sphi 0, %s184
  $region4: #{tspn_forward.1} parent=0 // loop_header_branch
    %16 = sbr.rel (%p14) target = $region8
  $region5: #{tspn_forward.1} parent=0 // loop_body
    %s18 = ssub.s32 %s13, 1
    %s19 = ssub.s32 %s13, 2
    %s20 = sadd.s32 %s13, 1
    %s21 = ssub.s32 %s13, %s20
    %p22 = scmp.eq.s32.totalorder %s21, 0
    %s24 = sadd.s32 %s23, 1
    %s25 = scalar_select %p22, %s23, %s24
    %p28 = pneg %p22
    %p29 = scmp.eq.s32.totalorder %s13, 1
    %p30 = por %p28, %p29
    %p31 = scmp.ne.s32.totalorder %s23, %s26
    %p32 = scmp.eq.s32.totalorder %s13, 0
    %p33 = por %p31, %p32
    %p34 = scmp.ne.s32.totalorder %s23, %s26
    %p35 = scmp.eq.s32.totalorder %s18, 1
    %p36 = por %p34, %p35
    %p37 = scmp.ne.s32.totalorder %s26, %s27
    %p38 = scmp.eq.s32.totalorder %s18, 0
    %p39 = por %p37, %p38
    %p40 = scmp.ne.s32.totalorder %s26, %s27
    %p41 = scmp.eq.s32.totalorder %s19, 1
    %p42 = por %p40, %p41
    %p44 = scmp.ne.s32.totalorder %s27, %s43
    %p45 = scmp.eq.s32.totalorder %s19, 0
    %p46 = por %p44, %p45
    %s47 = ssub.s32 %s13, %s20
    %p48 = scmp.eq.s32.totalorder %s47, 0
    %s50 = sadd.s32 %s49, 1
    %s51 = scalar_select %p48, %s49, %s50
    %p54 = pneg %p48
    %p55 = scmp.eq.s32.totalorder %s13, 1
    %p56 = por %p54, %p55
    %p57 = scmp.ne.s32.totalorder %s49, %s52
    %p58 = scmp.eq.s32.totalorder %s13, 0
    %p59 = por %p57, %p58
    %p60 = scmp.ne.s32.totalorder %s49, %s52
    %p61 = scmp.eq.s32.totalorder %s18, 1
    %p62 = por %p60, %p61
    %p63 = scmp.ne.s32.totalorder %s52, %s53
    %p64 = scmp.eq.s32.totalorder %s18, 0
    %p65 = por %p63, %p64
    %p66 = scmp.ne.s32.totalorder %s52, %s53
    %p67 = scmp.eq.s32.totalorder %s19, 1
    %p68 = por %p66, %p67
    %p70 = scmp.ne.s32.totalorder %s53, %s69
    %p71 = scmp.eq.s32.totalorder %s19, 0
    %p72 = por %p70, %p71
    %s74 = sadd.s32 %s73, 1
    %p77 = scmp.eq.s32.totalorder %s13, 1
    %p78 = scmp.ne.s32.totalorder %s73, %s75
    %p79 = scmp.eq.s32.totalorder %s13, 0
    %p80 = por %p78, %p79
    %p81 = scmp.ne.s32.totalorder %s73, %s75
    %p82 = scmp.eq.s32.totalorder %s18, 1
    %p83 = por %p81, %p82
    %p84 = scmp.ne.s32.totalorder %s75, %s76
    %p85 = scmp.eq.s32.totalorder %s18, 0
    %p86 = por %p84, %p85
    %p87 = scmp.ne.s32.totalorder %s75, %s76
    %p88 = scmp.eq.s32.totalorder %s19, 1
    %p89 = por %p87, %p88
    %p91 = scmp.ne.s32.totalorder %s76, %s90
    %p92 = scmp.eq.s32.totalorder %s19, 0
    %p93 = por %p91, %p92
    %s95 = sadd.s32 %s94, 1
    %p98 = scmp.eq.s32.totalorder %s13, 1
    %p99 = scmp.ne.s32.totalorder %s94, %s96
    %p100 = scmp.eq.s32.totalorder %s13, 0
    %p101 = por %p99, %p100
    %p102 = scmp.ne.s32.totalorder %s94, %s96
    %p103 = scmp.eq.s32.totalorder %s18, 1
    %p104 = por %p102, %p103
    %p105 = scmp.ne.s32.totalorder %s96, %s97
    %p106 = scmp.eq.s32.totalorder %s18, 0
    %p107 = por %p105, %p106
    %p108 = scmp.ne.s32.totalorder %s96, %s97
    %p109 = scmp.eq.s32.totalorder %s19, 1
    %p110 = por %p108, %p109
    %p112 = scmp.ne.s32.totalorder %s97, %s111
    %p113 = scmp.eq.s32.totalorder %s19, 0
    %p114 = por %p112, %p113
    %s116 = sadd.s32 %s115, 1
    %p119 = scmp.eq.s32.totalorder %s13, 1
    %p120 = scmp.ne.s32.totalorder %s115, %s117
    %p121 = scmp.eq.s32.totalorder %s13, 0
    %p122 = por %p120, %p121
    %p123 = scmp.ne.s32.totalorder %s115, %s117
    %p124 = scmp.eq.s32.totalorder %s18, 1
    %p125 = por %p123, %p124
    %p126 = scmp.ne.s32.totalorder %s117, %s118
    %p127 = scmp.eq.s32.totalorder %s18, 0
    %p128 = por %p126, %p127
    %p129 = scmp.ne.s32.totalorder %s117, %s118
    %p130 = scmp.eq.s32.totalorder %s19, 1
    %p131 = por %p129, %p130
    %p133 = scmp.ne.s32.totalorder %s118, %s132
    %p134 = scmp.eq.s32.totalorder %s19, 0
    %p135 = por %p133, %p134
    %s137 = sadd.s32 %s136, 1
    %p140 = scmp.eq.s32.totalorder %s13, 1
    %p141 = scmp.ne.s32.totalorder %s136, %s138
    %p142 = scmp.eq.s32.totalorder %s13, 0
    %p143 = por %p141, %p142
    %p144 = scmp.ne.s32.totalorder %s136, %s138
    %p145 = scmp.eq.s32.totalorder %s18, 1
    %p146 = por %p144, %p145
    %p147 = scmp.ne.s32.totalorder %s138, %s139
    %p148 = scmp.eq.s32.totalorder %s18, 0
    %p149 = por %p147, %p148
    %p150 = scmp.ne.s32.totalorder %s138, %s139
    %p151 = scmp.eq.s32.totalorder %s19, 1
    %p152 = por %p150, %p151
    %p154 = scmp.ne.s32.totalorder %s139, %s153
    %p155 = scmp.eq.s32.totalorder %s19, 0
    %p156 = por %p154, %p155
    %s158 = sadd.s32 %s157, 1
    %p161 = scmp.eq.s32.totalorder %s13, 1
    %p162 = scmp.ne.s32.totalorder %s157, %s159
    %p163 = scmp.eq.s32.totalorder %s13, 0
    %p164 = por %p162, %p163
    %p165 = scmp.ne.s32.totalorder %s157, %s159
    %p166 = scmp.eq.s32.totalorder %s18, 1
    %p167 = por %p165, %p166
    %p168 = scmp.ne.s32.totalorder %s159, %s160
    %p169 = scmp.eq.s32.totalorder %s18, 0
    %p170 = por %p168, %p169
    %p171 = scmp.ne.s32.totalorder %s159, %s160
    %p172 = scmp.eq.s32.totalorder %s19, 1
    %p173 = por %p171, %p172
    %p175 = scmp.ne.s32.totalorder %s160, %s174
    %p176 = scmp.eq.s32.totalorder %s19, 0
    %p177 = por %p175, %p176
    %s178 = ssub.s32 %s13, %s20
    %p179 = scmp.eq.s32.totalorder %s178, 0
    %s181 = sadd.s32 %s180, 1
    %s182 = scalar_select %p179, %s180, %s181
    %p185 = pneg %p179
    %p186 = scmp.eq.s32.totalorder %s13, 1
    %p187 = por %p185, %p186
    %p188 = scmp.ne.s32.totalorder %s180, %s183
    %p189 = scmp.eq.s32.totalorder %s13, 0
    %p190 = por %p188, %p189
    %p191 = scmp.ne.s32.totalorder %s180, %s183
    %p192 = scmp.eq.s32.totalorder %s18, 1
    %p193 = por %p191, %p192
    %p194 = scmp.ne.s32.totalorder %s183, %s184
    %p195 = scmp.eq.s32.totalorder %s18, 0
    %p196 = por %p194, %p195
    %p197 = scmp.ne.s32.totalorder %s183, %s184
    %p198 = scmp.eq.s32.totalorder %s19, 1
    %p199 = por %p197, %p198
    %p201 = scmp.ne.s32.totalorder %s184, %s200
    %p202 = scmp.eq.s32.totalorder %s19, 0
    %p203 = por %p201, %p202
    %p204 = scmp.le.s32.totalorder 1, %s13
    %p205 = scmp.lt.s32.totalorder %s13, 3
    %p206 = pnand %p204, %p205
    %p207 = pneg %p206
    // Predicated region
    $region9: #{tspn_forward.1} parent=5 // pred_check
      _
    $region10: #{tspn_forward.1} parent=5 // pred_check_branch
      %209 = sbr.rel (%p206) target = $region12
    $region11: #{tspn_forward.1} parent=5 // pred_region
      %s210 = ssub.s32 %s13, 1
      // Predicated region
      $region13: #{tspn_forward.1} parent=11 // pred_check
        %p211 = pneg %p86
      $region14: #{tspn_forward.1} parent=11 // pred_check_branch
        %213 = sbr.rel (%p211) target = $region16
      $region15: #{tspn_forward.1} parent=11 // pred_region
        _
      $region16: #{tspn_forward.1} parent=11 // pred_fallthru
        _
      // Predicated region
      $region17: #{tspn_forward.1} parent=11 // pred_check
        %p214 = pneg %p107
      $region18: #{tspn_forward.1} parent=11 // pred_check_branch
        %216 = sbr.rel (%p214) target = $region20
      $region19: #{tspn_forward.1} parent=11 // pred_region
        _
      $region20: #{tspn_forward.1} parent=11 // pred_fallthru
        _
      // Predicated region
      $region21: #{tspn_forward.1} parent=11 // pred_check
        %p217 = pneg %p128
      $region22: #{tspn_forward.1} parent=11 // pred_check_branch
        %219 = sbr.rel (%p217) target = $region24
      $region23: #{tspn_forward.1} parent=11 // pred_region
        _
      $region24: #{tspn_forward.1} parent=11 // pred_fallthru
        _
      // Predicated region
      $region25: #{tspn_forward.1} parent=11 // pred_check
        %p220 = pneg %p149
      $region26: #{tspn_forward.1} parent=11 // pred_check_branch
        %222 = sbr.rel (%p220) target = $region28
      $region27: #{tspn_forward.1} parent=11 // pred_region
        _
      $region28: #{tspn_forward.1} parent=11 // pred_fallthru
        _
      // Predicated region
      $region29: #{tspn_forward.1} parent=11 // pred_check
        %p223 = pneg %p170
      $region30: #{tspn_forward.1} parent=11 // pred_check_branch
        %225 = sbr.rel (%p223) target = $region32
      $region31: #{tspn_forward.1} parent=11 // pred_region
        _
      $region32: #{tspn_forward.1} parent=11 // pred_fallthru
        _
    $region12: #{tspn_forward.1} parent=5 // pred_fallthru
      _
    %p226 = scmp.lt.s32.totalorder %s13, 2
    // Predicated region
    $region33: #{tspn_forward.1} parent=5 // pred_check
      %p227 = pneg %p226
    $region34: #{tspn_forward.1} parent=5 // pred_check_branch
      %229 = sbr.rel (%p227) target = $region36
    $region35: #{tspn_forward.1} parent=5 // pred_region
      // Predicated region
      $region37: #{tspn_forward.1} parent=35 // pred_check
        %p230 = pneg %p33
      $region38: #{tspn_forward.1} parent=35 // pred_check_branch
        %232 = sbr.rel (%p230) target = $region40
      $region39: #{tspn_forward.1} parent=35 // pred_region
        %s233 = smul.u32 16, %s13
        %p234 = scmp.lt.s32.totalorder %s233, 31
        %s235 = scalar_select %p234, %s233, 31
        %s236 = smul.addr %s235, 8
        %s237 = scalar_lea.vmem %s0, %s236
        %s238 = smul.u32 16, %s13
      $region40: #{tspn_forward.1} parent=35 // pred_fallthru
        _
      // Predicated region
      $region41: #{tspn_forward.1} parent=35 // pred_check
        %p239 = pneg %p59
      $region42: #{tspn_forward.1} parent=35 // pred_check_branch
        %241 = sbr.rel (%p239) target = $region44
      $region43: #{tspn_forward.1} parent=35 // pred_region
        %s242 = smul.u32 16, %s13
        %p243 = scmp.lt.s32.totalorder %s242, 31
        %s244 = scalar_select %p243, %s242, 31
        %s245 = smul.addr %s244, 8
        %s246 = scalar_lea.vmem %s1, %s245
        %s247 = smul.u32 16, %s13
      $region44: #{tspn_forward.1} parent=35 // pred_fallthru
        _
    $region36: #{tspn_forward.1} parent=5 // pred_fallthru
      _
    %p248 = scmp.le.s32.totalorder 1, %s13
    %p249 = scmp.lt.s32.totalorder %s13, 3
    %p250 = pnand %p248, %p249
    %p251 = pneg %p250
    // Predicated region
    $region45: #{tspn_forward.1} parent=5 // pred_check
      _
    $region46: #{tspn_forward.1} parent=5 // pred_check_branch
      %253 = sbr.rel (%p250) target = $region48
    $region47: #{tspn_forward.1} parent=5 // pred_region
      %s254 = ssub.s32 %s13, 1
      %s255 = smul.u32 16, %s18
      %p256 = scmp.lt.s32.totalorder %s255, 31
      %s257 = scalar_select %p256, %s255, 31
      %s258 = smul.addr %s257, 8
      %s259 = scalar_lea.vmem %s0, %s258
      %p260 = pneg %p39
      %p261 = pneg %p36
      %s262 = smul.u32 16, %s18
      %p263 = scmp.lt.s32.totalorder %s262, 31
      %s264 = scalar_select %p263, %s262, 31
      %s265 = smul.addr %s264, 8
      %s266 = scalar_lea.vmem %s1, %s265
      %p267 = pneg %p65
      %p268 = pneg %p62
      %p269 = pneg %p86
      %p270 = pneg %p83
      %p271 = pneg %p107
      %p272 = pneg %p104
      %p273 = pneg %p128
      %p274 = pneg %p125
      %p275 = pneg %p149
      %p276 = pneg %p146
      %p277 = pneg %p170
      %p278 = pneg %p167
      %p279 = pneg %p196
      %p280 = pneg %p193
      %p281 = scmp.lt.s32.totalorder %s18, 1
      %s282 = scalar_select %p281, %s18, 1
      %s283 = smul.addr %s282, 8
      %s284 = scalar_lea.vmem %s7, %s283
      %s285 = smul.u32 16, %s18
      %p286 = scmp.lt.s32.totalorder %s285, 31
      %s287 = scalar_select %p286, %s285, 31
      %s288 = smul.addr %s287, 8
      %s289 = scalar_lea.vmem %s0, %s288
      %s290 = smul.u32 16, %s18
      %s291 = smul.u32 16, %s18
      %p292 = scmp.lt.s32.totalorder %s291, 31
      %s293 = scalar_select %p292, %s291, 31
      %s294 = smul.addr %s293, 8
      %s295 = scalar_lea.vmem %s1, %s294
      %s296 = smul.u32 16, %s18
      %p297 = scmp.lt.s32.totalorder %s18, 1
      %s298 = scalar_select %p297, %s18, 1
      %s299 = smul.addr %s298, 8
      %s300 = scalar_lea.vmem %s7, %s299
      %v301 = vld [vmem:[%s289] sm:$0xff]
      %v302 = vld [vmem:[%s289 + $0x8] sm:$0xff]
      %v303 = vld [vmem:[%s289 + $0x10] sm:$0xff]
      %v304 = vld [vmem:[%s289 + $0x18] sm:$0xff]
      %v305 = vld [vmem:[%s289 + $0x20] sm:$0xff]
      %v306 = vld [vmem:[%s289 + $0x28] sm:$0xff]
      %v307 = vld [vmem:[%s289 + $0x30] sm:$0xff]
      %v308 = vld [vmem:[%s289 + $0x38] sm:$0xff]
      %v309 = vld [vmem:[%s289 + $0x40] sm:$0xff]
      %v310 = vld [vmem:[%s289 + $0x48] sm:$0xff]
      %v311 = vld [vmem:[%s289 + $0x50] sm:$0xff]
      %v312 = vld [vmem:[%s289 + $0x58] sm:$0xff]
      %v313 = vld [vmem:[%s289 + $0x60] sm:$0xff]
      %v314 = vld [vmem:[%s289 + $0x68] sm:$0xff]
      %v315 = vld [vmem:[%s289 + $0x70] sm:$0xff]
      %v316 = vld [vmem:[%s289 + $0x78] sm:$0xff]
      %v317 = vld [vmem:[%s295] sm:$0xff]
      %v318 = vld [vmem:[%s295 + $0x8] sm:$0xff]
      %v319 = vld [vmem:[%s295 + $0x10] sm:$0xff]
      %v320 = vld [vmem:[%s295 + $0x18] sm:$0xff]
      %v321 = vld [vmem:[%s295 + $0x20] sm:$0xff]
      %v322 = vld [vmem:[%s295 + $0x28] sm:$0xff]
      %v323 = vld [vmem:[%s295 + $0x30] sm:$0xff]
      %v324 = vld [vmem:[%s295 + $0x38] sm:$0xff]
      %v325 = vld [vmem:[%s295 + $0x40] sm:$0xff]
      %v326 = vld [vmem:[%s295 + $0x48] sm:$0xff]
      %v327 = vld [vmem:[%s295 + $0x50] sm:$0xff]
      %v328 = vld [vmem:[%s295 + $0x58] sm:$0xff]
      %v329 = vld [vmem:[%s295 + $0x60] sm:$0xff]
      %v330 = vld [vmem:[%s295 + $0x68] sm:$0xff]
      %v331 = vld [vmem:[%s295 + $0x70] sm:$0xff]
      %v332 = vld [vmem:[%s295 + $0x78] sm:$0xff]
      %v333 = vld [vmem:[%s3] sm:$0xff]
      %v334 = vld [vmem:[%s3 + $0x8] sm:$0xff]
      %v335 = vld [vmem:[%s3 + $0x10] sm:$0xff]
      %v336 = vld [vmem:[%s3 + $0x18] sm:$0xff]
      %v337 = vld [vmem:[%s4] sm:$0x1]
      %v338 = vlaneseq
      %v339 = vshrl.u32 %v338, 7
      %v340 = vsub.s32 0, %v339
      %v341 = vrot.slane %v337, %v340
      %vm342 = vcmask 261120
      %v344 = vsel %vm342, %v301, 0
      %v347 = vsel %vm342, %v302, 0
      %v350 = vsel %vm342, %v303, 0
      %v353 = vsel %vm342, %v304, 0
      %v356 = vsel %vm342, %v305, 0
      %v359 = vsel %vm342, %v306, 0
      %v362 = vsel %vm342, %v307, 0
      %v365 = vsel %vm342, %v308, 0
      %v368 = vsel %vm342, %v309, 0
      %v371 = vsel %vm342, %v310, 0
      %v374 = vsel %vm342, %v311, 0
      %v377 = vsel %vm342, %v312, 0
      %v380 = vsel %vm342, %v313, 0
      %v383 = vsel %vm342, %v314, 0
      %v386 = vsel %vm342, %v315, 0
      %v389 = vsel %vm342, %v316, 0
      %391 = vmatprep.subr.mxu0 0.0
      %392 = vmatpush1.msra.mxu0 %v333
      %393 = vmatprep.subr.mxu0 0.0
      %394 = vmatpush1.msra.mxu0 %v334
      %395 = vmatprep.subr.mxu0 0.0
      %396 = vmatpush1.msra.mxu0 %v335
      %397 = vmatprep.subr.mxu0 0.0
      %398 = vmatpush1.msra.mxu0 %v336
      %399 = vmatprep.subr.mxu0 0.0
      %400 = vmatpush1.msra.mxu0 0.0
      %401 = vmatprep.subr.mxu0 0.0
      %402 = vmatpush1.msra.mxu0 0.0
      %403 = vmatprep.subr.mxu0 0.0
      %404 = vmatpush1.msra.mxu0 0.0
      %405 = vmatprep.subr.mxu0 0.0
      %406 = vmatpush1.msra.mxu0 0.0
      %407 = vmatprep.subr.mxu0 0.0
      %408 = vmatpush1.msra.mxu0 0.0
      %409 = vmatprep.subr.mxu0 0.0
      %410 = vmatpush1.msra.mxu0 0.0
      %411 = vmatprep.subr.mxu0 0.0
      %412 = vmatpush1.msra.mxu0 0.0
      %413 = vmatprep.subr.mxu0 0.0
      %414 = vmatpush1.msra.mxu0 0.0
      %415 = vmatprep.subr.mxu0 0.0
      %416 = vmatpush1.msra.mxu0 0.0
      %417 = vmatprep.subr.mxu0 0.0
      %418 = vmatpush1.msra.mxu0 0.0
      %419 = vmatprep.subr.mxu0 0.0
      %420 = vmatpush1.msra.mxu0 0.0
      %421 = vmatprep.subr.mxu0 0.0
      %422 = vmatpush1.msra.mxu0 0.0
      %423 = vmatprep.subr.mxu0 0.0
      %424 = vmatpush1.msra.mxu0 0.0
      %425 = vmatprep.subr.mxu0 0.0
      %426 = vmatpush1.msra.mxu0 0.0
      %427 = vmatprep.subr.mxu0 0.0
      %428 = vmatpush1.msra.mxu0 0.0
      %429 = vmatprep.subr.mxu0 0.0
      %430 = vmatpush1.msra.mxu0 0.0
      %431 = vmatprep.subr.mxu0 0.0
      %432 = vmatpush1.msra.mxu0 0.0
      %433 = vmatprep.subr.mxu0 0.0
      %434 = vmatpush1.msra.mxu0 0.0
      %435 = vmatprep.subr.mxu0 0.0
      %436 = vmatpush1.msra.mxu0 0.0
      %437 = vmatprep.subr.mxu0 0.0
      %438 = vmatpush1.msra.mxu0 0.0
      %439 = vmatprep.subr.mxu0 0.0
      %440 = vmatpush1.msra.mxu0 0.0
      %441 = vmatprep.subr.mxu0 0.0
      %442 = vmatpush1.msra.mxu0 0.0
      %443 = vmatprep.subr.mxu0 0.0
      %444 = vmatpush1.msra.mxu0 0.0
      %445 = vmatprep.subr.mxu0 0.0
      %446 = vmatpush1.msra.mxu0 0.0
      %447 = vmatprep.subr.mxu0 0.0
      %448 = vmatpush1.msra.mxu0 0.0
      %449 = vmatprep.subr.mxu0 0.0
      %450 = vmatpush1.msra.mxu0 0.0
      %451 = vmatprep.subr.mxu0 0.0
      %452 = vmatpush1.msra.mxu0 0.0
      %453 = vmatprep.subr.mxu0 0.0
      %454 = vmatpush1.msra.mxu0 0.0
      %455 = vmatprep.mubr.f32.mxu0 0.0
      %456 = vmatmul.mubr.f32.gmra.mrb[0].mxu0 %v344
      %v457 = vpop.f32.mrb[0].mxu0
      %v458 = vadd.f32 %v341, %v457
      %v459 = vpop.f32.mrb[0].mxu0
      %460 = vmatprep.mubr.f32.mxu0 0.0
      %461 = vmatmul.mubr.f32.gmra.mrb[0].mxu0 %v347
      %v462 = vpop.f32.mrb[0].mxu0
      %v463 = vadd.f32 %v341, %v462
      %v464 = vpop.f32.mrb[0].mxu0
      %465 = vmatprep.mubr.f32.mxu0 0.0
      %466 = vmatmul.mubr.f32.gmra.mrb[0].mxu0 %v350
      %v467 = vpop.f32.mrb[0].mxu0
      %v468 = vadd.f32 %v341, %v467
      %v469 = vpop.f32.mrb[0].mxu0
      %470 = vmatprep.mubr.f32.mxu0 0.0
      %471 = vmatmul.mubr.f32.gmra.mrb[0].mxu0 %v353
      %v472 = vpop.f32.mrb[0].mxu0
      %v473 = vadd.f32 %v341, %v472
      %v474 = vpop.f32.mrb[0].mxu0
      %475 = vmatprep.mubr.f32.mxu0 0.0
      %476 = vmatmul.mubr.f32.gmra.mrb[0].mxu0 %v356
      %v477 = vpop.f32.mrb[0].mxu0
      %v478 = vadd.f32 %v341, %v477
      %v479 = vpop.f32.mrb[0].mxu0
      %480 = vmatprep.mubr.f32.mxu0 0.0
      %481 = vmatmul.mubr.f32.gmra.mrb[0].mxu0 %v359
      %v482 = vpop.f32.mrb[0].mxu0
      %v483 = vadd.f32 %v341, %v482
      %v484 = vpop.f32.mrb[0].mxu0
      %485 = vmatprep.mubr.f32.mxu0 0.0
      %486 = vmatmul.mubr.f32.gmra.mrb[0].mxu0 %v362
      %v487 = vpop.f32.mrb[0].mxu0
      %v488 = vadd.f32 %v341, %v487
      %v489 = vpop.f32.mrb[0].mxu0
      %490 = vmatprep.mubr.f32.mxu0 0.0
      %491 = vmatmul.mubr.f32.gmra.mrb[0].mxu0 %v365
      %v492 = vpop.f32.mrb[0].mxu0
      %v493 = vadd.f32 %v341, %v492
      %v494 = vpop.f32.mrb[0].mxu0
      %495 = vmatprep.mubr.f32.mxu0 0.0
      %496 = vmatmul.mubr.f32.gmra.mrb[0].mxu0 %v368
      %v497 = vpop.f32.mrb[0].mxu0
      %v498 = vadd.f32 %v341, %v497
      %v499 = vpop.f32.mrb[0].mxu0
      %500 = vmatprep.mubr.f32.mxu0 0.0
      %501 = vmatmul.mubr.f32.gmra.mrb[0].mxu0 %v371
      %v502 = vpop.f32.mrb[0].mxu0
      %v503 = vadd.f32 %v341, %v502
      %v504 = vpop.f32.mrb[0].mxu0
      %505 = vmatprep.mubr.f32.mxu0 0.0
      %506 = vmatmul.mubr.f32.gmra.mrb[0].mxu0 %v374
      %v507 = vpop.f32.mrb[0].mxu0
      %v508 = vadd.f32 %v341, %v507
      %v509 = vpop.f32.mrb[0].mxu0
      %510 = vmatprep.mubr.f32.mxu0 0.0
      %511 = vmatmul.mubr.f32.gmra.mrb[0].mxu0 %v377
      %v512 = vpop.f32.mrb[0].mxu0
      %v513 = vadd.f32 %v341, %v512
      %v514 = vpop.f32.mrb[0].mxu0
      %515 = vmatprep.mubr.f32.mxu0 0.0
      %516 = vmatmul.mubr.f32.gmra.mrb[0].mxu0 %v380
      %v517 = vpop.f32.mrb[0].mxu0
      %v518 = vadd.f32 %v341, %v517
      %v519 = vpop.f32.mrb[0].mxu0
      %520 = vmatprep.mubr.f32.mxu0 0.0
      %521 = vmatmul.mubr.f32.gmra.mrb[0].mxu0 %v383
      %v522 = vpop.f32.mrb[0].mxu0
      %v523 = vadd.f32 %v341, %v522
      %v524 = vpop.f32.mrb[0].mxu0
      %525 = vmatprep.mubr.f32.mxu0 0.0
      %526 = vmatmul.mubr.f32.gmra.mrb[0].mxu0 %v386
      %v527 = vpop.f32.mrb[0].mxu0
      %v528 = vadd.f32 %v341, %v527
      %v529 = vpop.f32.mrb[0].mxu0
      %530 = vmatprep.mubr.f32.mxu0 0.0
      %531 = vmatmul.mubr.f32.gmra.mrb[0].mxu0 %v389
      %v532 = vpop.f32.mrb[0].mxu0
      %v533 = vadd.f32 %v341, %v532
      %v534 = vpop.f32.mrb[0].mxu0
      %535 = vdwg.mxu0
      %536 = vmatprep.subr.mxu0 0.0
      %537 = vmatpush1.msra.mxu0 %v458
      %538 = vmatprep.subr.mxu0 0.0
      %539 = vmatpush1.msra.mxu0 %v463
      %540 = vmatprep.subr.mxu0 0.0
      %541 = vmatpush1.msra.mxu0 %v468
      %542 = vmatprep.subr.mxu0 0.0
      %543 = vmatpush1.msra.mxu0 %v473
      %544 = vmatprep.subr.mxu0 0.0
      %545 = vmatpush1.msra.mxu0 %v478
      %546 = vmatprep.subr.mxu0 0.0
      %547 = vmatpush1.msra.mxu0 %v483
      %548 = vmatprep.subr.mxu0 0.0
      %549 = vmatpush1.msra.mxu0 %v488
      %550 = vmatprep.subr.mxu0 0.0
      %551 = vmatpush1.msra.mxu0 %v493
      %552 = vmatprep.subr.mxu0 0.0
      %553 = vmatpush1.msra.mxu0 %v498
      %554 = vmatprep.subr.mxu0 0.0
      %555 = vmatpush1.msra.mxu0 %v503
      %556 = vmatprep.subr.mxu0 0.0
      %557 = vmatpush1.msra.mxu0 %v508
      %558 = vmatprep.subr.mxu0 0.0
      %559 = vmatpush1.msra.mxu0 %v513
      %560 = vmatprep.subr.mxu0 0.0
      %561 = vmatpush1.msra.mxu0 %v518
      %562 = vmatprep.subr.mxu0 0.0
      %563 = vmatpush1.msra.mxu0 %v523
      %564 = vmatprep.subr.mxu0 0.0
      %565 = vmatpush1.msra.mxu0 %v528
      %566 = vmatprep.subr.mxu0 0.0
      %567 = vmatpush1.msra.mxu0 %v533
      %568 = vmatprep.subr.mxu0 0.0
      %569 = vmatpush1.msra.mxu0 0.0
      %570 = vmatprep.subr.mxu0 0.0
      %571 = vmatpush1.msra.mxu0 0.0
      %572 = vmatprep.subr.mxu0 0.0
      %573 = vmatpush1.msra.mxu0 0.0
      %574 = vmatprep.subr.mxu0 0.0
      %575 = vmatpush1.msra.mxu0 0.0
      %576 = vmatprep.subr.mxu0 0.0
      %577 = vmatpush1.msra.mxu0 0.0
      %578 = vmatprep.subr.mxu0 0.0
      %579 = vmatpush1.msra.mxu0 0.0
      %580 = vmatprep.subr.mxu0 0.0
      %581 = vmatpush1.msra.mxu0 0.0
      %582 = vmatprep.subr.mxu0 0.0
      %583 = vmatpush1.msra.mxu0 0.0
      %584 = vmatprep.subr.mxu0 0.0
      %585 = vmatpush1.msra.mxu0 0.0
      %586 = vmatprep.subr.mxu0 0.0
      %587 = vmatpush1.msra.mxu0 0.0
      %588 = vmatprep.subr.mxu0 0.0
      %589 = vmatpush1.msra.mxu0 0.0
      %590 = vmatprep.subr.mxu0 0.0
      %591 = vmatpush1.msra.mxu0 0.0
      %592 = vmatprep.subr.mxu0 0.0
      %593 = vmatpush1.msra.mxu0 0.0
      %594 = vmatprep.subr.mxu0 0.0
      %595 = vmatpush1.msra.mxu0 0.0
      %596 = vmatprep.subr.mxu0 0.0
      %597 = vmatpush1.msra.mxu0 0.0
      %598 = vmatprep.subr.mxu0 0.0
      %599 = vmatpush1.msra.mxu0 0.0
      %600 = vmatprep.mubr.f32.mxu0 0.0
      %601 = vmatmul.mubr.f32.gmra.mrb[0].mxu0 %v317
      %v602 = vpop.f32.mrb[0].mxu0
      %v603 = vadd.f32 0.0, %v602
      %v604 = vpop.f32.mrb[0].mxu0
      %605 = vmatprep.mubr.f32.mxu0 0.0
      %606 = vmatmul.mubr.f32.gmra.mrb[0].mxu0 %v318
      %v607 = vpop.f32.mrb[0].mxu0
      %v608 = vadd.f32 0.0, %v607
      %v609 = vpop.f32.mrb[0].mxu0
      %610 = vmatprep.mubr.f32.mxu0 0.0
      %611 = vmatmul.mubr.f32.gmra.mrb[0].mxu0 %v319
      %v612 = vpop.f32.mrb[0].mxu0
      %v613 = vadd.f32 0.0, %v612
      %v614 = vpop.f32.mrb[0].mxu0
      %615 = vmatprep.mubr.f32.mxu0 0.0
      %616 = vmatmul.mubr.f32.gmra.mrb[0].mxu0 %v320
      %v617 = vpop.f32.mrb[0].mxu0
      %v618 = vadd.f32 0.0, %v617
      %v619 = vpop.f32.mrb[0].mxu0
      %620 = vmatprep.mubr.f32.mxu0 0.0
      %621 = vmatmul.mubr.f32.gmra.mrb[0].mxu0 %v321
      %v622 = vpop.f32.mrb[0].mxu0
      %v623 = vadd.f32 0.0, %v622
      %v624 = vpop.f32.mrb[0].mxu0
      %625 = vmatprep.mubr.f32.mxu0 0.0
      %626 = vmatmul.mubr.f32.gmra.mrb[0].mxu0 %v322
      %v627 = vpop.f32.mrb[0].mxu0
      %v628 = vadd.f32 0.0, %v627
      %v629 = vpop.f32.mrb[0].mxu0
      %630 = vmatprep.mubr.f32.mxu0 0.0
      %631 = vmatmul.mubr.f32.gmra.mrb[0].mxu0 %v323
      %v632 = vpop.f32.mrb[0].mxu0
      %v633 = vadd.f32 0.0, %v632
      %v634 = vpop.f32.mrb[0].mxu0
      %635 = vmatprep.mubr.f32.mxu0 0.0
      %636 = vmatmul.mubr.f32.gmra.mrb[0].mxu0 %v324
      %v637 = vpop.f32.mrb[0].mxu0
      %v638 = vadd.f32 0.0, %v637
      %v639 = vpop.f32.mrb[0].mxu0
      %640 = vmatprep.mubr.f32.mxu0 0.0
      %641 = vmatmul.mubr.f32.gmra.mrb[0].mxu0 %v325
      %v642 = vpop.f32.mrb[0].mxu0
      %v643 = vadd.f32 0.0, %v642
      %v644 = vpop.f32.mrb[0].mxu0
      %645 = vmatprep.mubr.f32.mxu0 0.0
      %646 = vmatmul.mubr.f32.gmra.mrb[0].mxu0 %v326
      %v647 = vpop.f32.mrb[0].mxu0
      %v648 = vadd.f32 0.0, %v647
      %v649 = vpop.f32.mrb[0].mxu0
      %650 = vmatprep.mubr.f32.mxu0 0.0
      %651 = vmatmul.mubr.f32.gmra.mrb[0].mxu0 %v327
      %v652 = vpop.f32.mrb[0].mxu0
      %v653 = vadd.f32 0.0, %v652
      %v654 = vpop.f32.mrb[0].mxu0
      %655 = vmatprep.mubr.f32.mxu0 0.0
      %656 = vmatmul.mubr.f32.gmra.mrb[0].mxu0 %v328
      %v657 = vpop.f32.mrb[0].mxu0
      %v658 = vadd.f32 0.0, %v657
      %v659 = vpop.f32.mrb[0].mxu0
      %660 = vmatprep.mubr.f32.mxu0 0.0
      %661 = vmatmul.mubr.f32.gmra.mrb[0].mxu0 %v329
      %v662 = vpop.f32.mrb[0].mxu0
      %v663 = vadd.f32 0.0, %v662
      %v664 = vpop.f32.mrb[0].mxu0
      %665 = vmatprep.mubr.f32.mxu0 0.0
      %666 = vmatmul.mubr.f32.gmra.mrb[0].mxu0 %v330
      %v667 = vpop.f32.mrb[0].mxu0
      %v668 = vadd.f32 0.0, %v667
      %v669 = vpop.f32.mrb[0].mxu0
      %670 = vmatprep.mubr.f32.mxu0 0.0
      %671 = vmatmul.mubr.f32.gmra.mrb[0].mxu0 %v331
      %v672 = vpop.f32.mrb[0].mxu0
      %v673 = vadd.f32 0.0, %v672
      %v674 = vpop.f32.mrb[0].mxu0
      %675 = vmatprep.mubr.f32.mxu0 0.0
      %676 = vmatmul.mubr.f32.gmra.mrb[0].mxu0 %v332
      %v677 = vpop.f32.mrb[0].mxu0
      %v678 = vadd.f32 0.0, %v677
      %v679 = vpop.f32.mrb[0].mxu0
      %680 = vdwg.mxu0
      %s681 = scalar_lea.vmem %s3, 32
      %v682 = vld [vmem:[%s681] sm:$0xff]
      %v683 = vld [vmem:[%s681 + $0x8] sm:$0xff]
      %v684 = vld [vmem:[%s681 + $0x10] sm:$0xff]
      %v685 = vld [vmem:[%s681 + $0x18] sm:$0xff]
      %v686 = vld [vmem:[%s4 + $0x1] sm:$0x1]
      %v687 = vlaneseq
      %v688 = vshrl.u32 %v687, 7
      %v689 = vsub.s32 0, %v688
      %v690 = vrot.slane %v686, %v689
      %v692 = vsel %vm342, %v603, 0
      %v695 = vsel %vm342, %v608, 0
      %v698 = vsel %vm342, %v613, 0
      %v701 = vsel %vm342, %v618, 0
      %v704 = vsel %vm342, %v623, 0
      %v707 = vsel %vm342, %v628, 0
      %v710 = vsel %vm342, %v633, 0
      %v713 = vsel %vm342, %v638, 0
      %v716 = vsel %vm342, %v643, 0
      %v719 = vsel %vm342, %v648, 0
      %v722 = vsel %vm342, %v653, 0
      %v725 = vsel %vm342, %v658, 0
      %v728 = vsel %vm342, %v663, 0
      %v731 = vsel %vm342, %v668, 0
      %v734 = vsel %vm342, %v673, 0
      %v737 = vsel %vm342, %v678, 0
      %739 = vmatprep.subr.mxu0 0.0
      %740 = vmatpush1.msra.mxu0 %v682
      %741 = vmatprep.subr.mxu0 0.0
      %742 = vmatpush1.msra.mxu0 %v683
      %743 = vmatprep.subr.mxu0 0.0
      %744 = vmatpush1.msra.mxu0 %v684
      %745 = vmatprep.subr.mxu0 0.0
      %746 = vmatpush1.msra.mxu0 %v685
      %747 = vmatprep.subr.mxu0 0.0
      %748 = vmatpush1.msra.mxu0 0.0
      %749 = vmatprep.subr.mxu0 0.0
      %750 = vmatpush1.msra.mxu0 0.0
      %751 = vmatprep.subr.mxu0 0.0
      %752 = vmatpush1.msra.mxu0 0.0
      %753 = vmatprep.subr.mxu0 0.0
      %754 = vmatpush1.msra.mxu0 0.0
      %755 = vmatprep.subr.mxu0 0.0
      %756 = vmatpush1.msra.mxu0 0.0
      %757 = vmatprep.subr.mxu0 0.0
      %758 = vmatpush1.msra.mxu0 0.0
      %759 = vmatprep.subr.mxu0 0.0
      %760 = vmatpush1.msra.mxu0 0.0
      %761 = vmatprep.subr.mxu0 0.0
      %762 = vmatpush1.msra.mxu0 0.0
      %763 = vmatprep.subr.mxu0 0.0
      %764 = vmatpush1.msra.mxu0 0.0
      %765 = vmatprep.subr.mxu0 0.0
      %766 = vmatpush1.msra.mxu0 0.0
      %767 = vmatprep.subr.mxu0 0.0
      %768 = vmatpush1.msra.mxu0 0.0
      %769 = vmatprep.subr.mxu0 0.0
      %770 = vmatpush1.msra.mxu0 0.0
      %771 = vmatprep.subr.mxu0 0.0
      %772 = vmatpush1.msra.mxu0 0.0
      %773 = vmatprep.subr.mxu0 0.0
      %774 = vmatpush1.msra.mxu0 0.0
      %775 = vmatprep.subr.mxu0 0.0
      %776 = vmatpush1.msra.mxu0 0.0
      %777 = vmatprep.subr.mxu0 0.0
      %778 = vmatpush1.msra.mxu0 0.0
      %779 = vmatprep.subr.mxu0 0.0
      %780 = vmatpush1.msra.mxu0 0.0
      %781 = vmatprep.subr.mxu0 0.0
      %782 = vmatpush1.msra.mxu0 0.0
      %783 = vmatprep.subr.mxu0 0.0
      %784 = vmatpush1.msra.mxu0 0.0
      %785 = vmatprep.subr.mxu0 0.0
      %786 = vmatpush1.msra.mxu0 0.0
      %787 = vmatprep.subr.mxu0 0.0
      %788 = vmatpush1.msra.mxu0 0.0
      %789 = vmatprep.subr.mxu0 0.0
      %790 = vmatpush1.msra.mxu0 0.0
      %791 = vmatprep.subr.mxu0 0.0
      %792 = vmatpush1.msra.mxu0 0.0
      %793 = vmatprep.subr.mxu0 0.0
      %794 = vmatpush1.msra.mxu0 0.0
      %795 = vmatprep.subr.mxu0 0.0
      %796 = vmatpush1.msra.mxu0 0.0
      %797 = vmatprep.subr.mxu0 0.0
      %798 = vmatpush1.msra.mxu0 0.0
      %799 = vmatprep.subr.mxu0 0.0
      %800 = vmatpush1.msra.mxu0 0.0
      %801 = vmatprep.subr.mxu0 0.0
      %802 = vmatpush1.msra.mxu0 0.0
      %803 = vmatprep.mubr.f32.mxu0 0.0
      %804 = vmatmul.mubr.f32.gmra.mrb[0].mxu0 %v692
      %v805 = vpop.f32.mrb[0].mxu0
      %v806 = vadd.f32 %v690, %v805
      %v807 = vpop.f32.mrb[0].mxu0
      %808 = vmatprep.mubr.f32.mxu0 0.0
      %809 = vmatmul.mubr.f32.gmra.mrb[0].mxu0 %v695
      %v810 = vpop.f32.mrb[0].mxu0
      %v811 = vadd.f32 %v690, %v810
      %v812 = vpop.f32.mrb[0].mxu0
      %813 = vmatprep.mubr.f32.mxu0 0.0
      %814 = vmatmul.mubr.f32.gmra.mrb[0].mxu0 %v698
      %v815 = vpop.f32.mrb[0].mxu0
      %v816 = vadd.f32 %v690, %v815
      %v817 = vpop.f32.mrb[0].mxu0
      %818 = vmatprep.mubr.f32.mxu0 0.0
      %819 = vmatmul.mubr.f32.gmra.mrb[0].mxu0 %v701
      %v820 = vpop.f32.mrb[0].mxu0
      %v821 = vadd.f32 %v690, %v820
      %v822 = vpop.f32.mrb[0].mxu0
      %823 = vmatprep.mubr.f32.mxu0 0.0
      %824 = vmatmul.mubr.f32.gmra.mrb[0].mxu0 %v704
      %v825 = vpop.f32.mrb[0].mxu0
      %v826 = vadd.f32 %v690, %v825
      %v827 = vpop.f32.mrb[0].mxu0
      %828 = vmatprep.mubr.f32.mxu0 0.0
      %829 = vmatmul.mubr.f32.gmra.mrb[0].mxu0 %v707
      %v830 = vpop.f32.mrb[0].mxu0
      %v831 = vadd.f32 %v690, %v830
      %v832 = vpop.f32.mrb[0].mxu0
      %833 = vmatprep.mubr.f32.mxu0 0.0
      %834 = vmatmul.mubr.f32.gmra.mrb[0].mxu0 %v710
      %v835 = vpop.f32.mrb[0].mxu0
      %v836 = vadd.f32 %v690, %v835
      %v837 = vpop.f32.mrb[0].mxu0
      %838 = vmatprep.mubr.f32.mxu0 0.0
      %839 = vmatmul.mubr.f32.gmra.mrb[0].mxu0 %v713
      %v840 = vpop.f32.mrb[0].mxu0
      %v841 = vadd.f32 %v690, %v840
      %v842 = vpop.f32.mrb[0].mxu0
      %843 = vmatprep.mubr.f32.mxu0 0.0
      %844 = vmatmul.mubr.f32.gmra.mrb[0].mxu0 %v716
      %v845 = vpop.f32.mrb[0].mxu0
      %v846 = vadd.f32 %v690, %v845
      %v847 = vpop.f32.mrb[0].mxu0
      %848 = vmatprep.mubr.f32.mxu0 0.0
      %849 = vmatmul.mubr.f32.gmra.mrb[0].mxu0 %v719
      %v850 = vpop.f32.mrb[0].mxu0
      %v851 = vadd.f32 %v690, %v850
      %v852 = vpop.f32.mrb[0].mxu0
      %853 = vmatprep.mubr.f32.mxu0 0.0
      %854 = vmatmul.mubr.f32.gmra.mrb[0].mxu0 %v722
      %v855 = vpop.f32.mrb[0].mxu0
      %v856 = vadd.f32 %v690, %v855
      %v857 = vpop.f32.mrb[0].mxu0
      %858 = vmatprep.mubr.f32.mxu0 0.0
      %859 = vmatmul.mubr.f32.gmra.mrb[0].mxu0 %v725
      %v860 = vpop.f32.mrb[0].mxu0
      %v861 = vadd.f32 %v690, %v860
      %v862 = vpop.f32.mrb[0].mxu0
      %863 = vmatprep.mubr.f32.mxu0 0.0
      %864 = vmatmul.mubr.f32.gmra.mrb[0].mxu0 %v728
      %v865 = vpop.f32.mrb[0].mxu0
      %v866 = vadd.f32 %v690, %v865
      %v867 = vpop.f32.mrb[0].mxu0
      %868 = vmatprep.mubr.f32.mxu0 0.0
      %869 = vmatmul.mubr.f32.gmra.mrb[0].mxu0 %v731
      %v870 = vpop.f32.mrb[0].mxu0
      %v871 = vadd.f32 %v690, %v870
      %v872 = vpop.f32.mrb[0].mxu0
      %873 = vmatprep.mubr.f32.mxu0 0.0
      %874 = vmatmul.mubr.f32.gmra.mrb[0].mxu0 %v734
      %v875 = vpop.f32.mrb[0].mxu0
      %v876 = vadd.f32 %v690, %v875
      %v877 = vpop.f32.mrb[0].mxu0
      %878 = vmatprep.mubr.f32.mxu0 0.0
      %879 = vmatmul.mubr.f32.gmra.mrb[0].mxu0 %v737
      %v880 = vpop.f32.mrb[0].mxu0
      %v881 = vadd.f32 %v690, %v880
      %v882 = vpop.f32.mrb[0].mxu0
      %883 = vdwg.mxu0
      %v884 = vsel %vm342, %v806, 0.0
      %885 = vadd.xlane.f32.xlu0 %v884
      %v886 = vpop.xlane.xlu0 %885
      %v887 = vsel %vm342, %v811, 0.0
      %888 = vadd.xlane.f32.xlu0 %v887
      %v889 = vpop.xlane.xlu0 %888
      %v890 = vsel %vm342, %v816, 0.0
      %891 = vadd.xlane.f32.xlu0 %v890
      %v892 = vpop.xlane.xlu0 %891
      %v893 = vsel %vm342, %v821, 0.0
      %894 = vadd.xlane.f32.xlu0 %v893
      %v895 = vpop.xlane.xlu0 %894
      %v896 = vsel %vm342, %v826, 0.0
      %897 = vadd.xlane.f32.xlu0 %v896
      %v898 = vpop.xlane.xlu0 %897
      %v899 = vsel %vm342, %v831, 0.0
      %900 = vadd.xlane.f32.xlu0 %v899
      %v901 = vpop.xlane.xlu0 %900
      %v902 = vsel %vm342, %v836, 0.0
      %903 = vadd.xlane.f32.xlu0 %v902
      %v904 = vpop.xlane.xlu0 %903
      %v905 = vsel %vm342, %v841, 0.0
      %906 = vadd.xlane.f32.xlu0 %v905
      %v907 = vpop.xlane.xlu0 %906
      %v908 = vsel %vm342, %v846, 0.0
      %909 = vadd.xlane.f32.xlu0 %v908
      %v910 = vpop.xlane.xlu0 %909
      %v911 = vsel %vm342, %v851, 0.0
      %912 = vadd.xlane.f32.xlu0 %v911
      %v913 = vpop.xlane.xlu0 %912
      %v914 = vsel %vm342, %v856, 0.0
      %915 = vadd.xlane.f32.xlu0 %v914
      %v916 = vpop.xlane.xlu0 %915
      %v917 = vsel %vm342, %v861, 0.0
      %918 = vadd.xlane.f32.xlu0 %v917
      %v919 = vpop.xlane.xlu0 %918
      %v920 = vsel %vm342, %v866, 0.0
      %921 = vadd.xlane.f32.xlu0 %v920
      %v922 = vpop.xlane.xlu0 %921
      %v923 = vsel %vm342, %v871, 0.0
      %924 = vadd.xlane.f32.xlu0 %v923
      %v925 = vpop.xlane.xlu0 %924
      %v926 = vsel %vm342, %v876, 0.0
      %927 = vadd.xlane.f32.xlu0 %v926
      %v928 = vpop.xlane.xlu0 %927
      %v929 = vsel %vm342, %v881, 0.0
      %930 = vadd.xlane.f32.xlu0 %v929
      %v931 = vpop.xlane.xlu0 %930
      %v932 = vrcp.pop 32.0
      %v933 = vmul.f32 %v886, %v932
      %v934 = vmul.f32 %v889, %v932
      %v935 = vmul.f32 %v892, %v932
      %v936 = vmul.f32 %v895, %v932
      %v937 = vmul.f32 %v898, %v932
      %v938 = vmul.f32 %v901, %v932
      %v939 = vmul.f32 %v904, %v932
      %v940 = vmul.f32 %v907, %v932
      %v941 = vmul.f32 %v910, %v932
      %v942 = vmul.f32 %v913, %v932
      %v943 = vmul.f32 %v916, %v932
      %v944 = vmul.f32 %v919, %v932
      %v945 = vmul.f32 %v922, %v932
      %v946 = vmul.f32 %v925, %v932
      %v947 = vmul.f32 %v928, %v932
      %v948 = vmul.f32 %v931, %v932
      %v949 = vsub.f32 %v806, %v933
      %v950 = vsub.f32 %v811, %v934
      %v951 = vsub.f32 %v816, %v935
      %v952 = vsub.f32 %v821, %v936
      %v953 = vsub.f32 %v826, %v937
      %v954 = vsub.f32 %v831, %v938
      %v955 = vsub.f32 %v836, %v939
      %v956 = vsub.f32 %v841, %v940
      %v957 = vsub.f32 %v846, %v941
      %v958 = vsub.f32 %v851, %v942
      %v959 = vsub.f32 %v856, %v943
      %v960 = vsub.f32 %v861, %v944
      %v961 = vsub.f32 %v866, %v945
      %v962 = vsub.f32 %v871, %v946
      %v963 = vsub.f32 %v876, %v947
      %v964 = vsub.f32 %v881, %v948
      %v965 = vmul.f32 %v949, %v949
      %v966 = vmul.f32 %v950, %v950
      %v967 = vmul.f32 %v951, %v951
      %v968 = vmul.f32 %v952, %v952
      %v969 = vmul.f32 %v953, %v953
      %v970 = vmul.f32 %v954, %v954
      %v971 = vmul.f32 %v955, %v955
      %v972 = vmul.f32 %v956, %v956
      %v973 = vmul.f32 %v957, %v957
      %v974 = vmul.f32 %v958, %v958
      %v975 = vmul.f32 %v959, %v959
      %v976 = vmul.f32 %v960, %v960
      %v977 = vmul.f32 %v961, %v961
      %v978 = vmul.f32 %v962, %v962
      %v979 = vmul.f32 %v963, %v963
      %v980 = vmul.f32 %v964, %v964
      %v981 = vsel %vm342, %v965, 0.0
      %982 = vadd.xlane.f32.xlu0 %v981
      %v983 = vpop.xlane.xlu0 %982
      %v984 = vsel %vm342, %v966, 0.0
      %985 = vadd.xlane.f32.xlu0 %v984
      %v986 = vpop.xlane.xlu0 %985
      %v987 = vsel %vm342, %v967, 0.0
      %988 = vadd.xlane.f32.xlu0 %v987
      %v989 = vpop.xlane.xlu0 %988
      %v990 = vsel %vm342, %v968, 0.0
      %991 = vadd.xlane.f32.xlu0 %v990
      %v992 = vpop.xlane.xlu0 %991
      %v993 = vsel %vm342, %v969, 0.0
      %994 = vadd.xlane.f32.xlu0 %v993
      %v995 = vpop.xlane.xlu0 %994
      %v996 = vsel %vm342, %v970, 0.0
      %997 = vadd.xlane.f32.xlu0 %v996
      %v998 = vpop.xlane.xlu0 %997
      %v999 = vsel %vm342, %v971, 0.0
      %1000 = vadd.xlane.f32.xlu0 %v999
      %v1001 = vpop.xlane.xlu0 %1000
      %v1002 = vsel %vm342, %v972, 0.0
      %1003 = vadd.xlane.f32.xlu0 %v1002
      %v1004 = vpop.xlane.xlu0 %1003
      %v1005 = vsel %vm342, %v973, 0.0
      %1006 = vadd.xlane.f32.xlu0 %v1005
      %v1007 = vpop.xlane.xlu0 %1006
      %v1008 = vsel %vm342, %v974, 0.0
      %1009 = vadd.xlane.f32.xlu0 %v1008
      %v1010 = vpop.xlane.xlu0 %1009
      %v1011 = vsel %vm342, %v975, 0.0
      %1012 = vadd.xlane.f32.xlu0 %v1011
      %v1013 = vpop.xlane.xlu0 %1012
      %v1014 = vsel %vm342, %v976, 0.0
      %1015 = vadd.xlane.f32.xlu0 %v1014
      %v1016 = vpop.xlane.xlu0 %1015
      %v1017 = vsel %vm342, %v977, 0.0
      %1018 = vadd.xlane.f32.xlu0 %v1017
      %v1019 = vpop.xlane.xlu0 %1018
      %v1020 = vsel %vm342, %v978, 0.0
      %1021 = vadd.xlane.f32.xlu0 %v1020
      %v1022 = vpop.xlane.xlu0 %1021
      %v1023 = vsel %vm342, %v979, 0.0
      %1024 = vadd.xlane.f32.xlu0 %v1023
      %v1025 = vpop.xlane.xlu0 %1024
      %v1026 = vsel %vm342, %v980, 0.0
      %1027 = vadd.xlane.f32.xlu0 %v1026
      %v1028 = vpop.xlane.xlu0 %1027
      %v1029 = vmul.f32 %v983, %v932
      %v1030 = vmul.f32 %v986, %v932
      %v1031 = vmul.f32 %v989, %v932
      %v1032 = vmul.f32 %v992, %v932
      %v1033 = vmul.f32 %v995, %v932
      %v1034 = vmul.f32 %v998, %v932
      %v1035 = vmul.f32 %v1001, %v932
      %v1036 = vmul.f32 %v1004, %v932
      %v1037 = vmul.f32 %v1007, %v932
      %v1038 = vmul.f32 %v1010, %v932
      %v1039 = vmul.f32 %v1013, %v932
      %v1040 = vmul.f32 %v1016, %v932
      %v1041 = vmul.f32 %v1019, %v932
      %v1042 = vmul.f32 %v1022, %v932
      %v1043 = vmul.f32 %v1025, %v932
      %v1044 = vmul.f32 %v1028, %v932
      %v1045 = vadd.f32 %v1029, 1e-05
      %v1046 = vadd.f32 %v1030, 1e-05
      %v1047 = vadd.f32 %v1031, 1e-05
      %v1048 = vadd.f32 %v1032, 1e-05
      %v1049 = vadd.f32 %v1033, 1e-05
      %v1050 = vadd.f32 %v1034, 1e-05
      %v1051 = vadd.f32 %v1035, 1e-05
      %v1052 = vadd.f32 %v1036, 1e-05
      %v1053 = vadd.f32 %v1037, 1e-05
      %v1054 = vadd.f32 %v1038, 1e-05
      %v1055 = vadd.f32 %v1039, 1e-05
      %v1056 = vadd.f32 %v1040, 1e-05
      %v1057 = vadd.f32 %v1041, 1e-05
      %v1058 = vadd.f32 %v1042, 1e-05
      %v1059 = vadd.f32 %v1043, 1e-05
      %v1060 = vadd.f32 %v1044, 1e-05
      %v1061 = vrsqrt.pop %v1045
      %v1062 = vrsqrt.pop %v1046
      %v1063 = vrsqrt.pop %v1047
      %v1064 = vrsqrt.pop %v1048
      %v1065 = vrsqrt.pop %v1049
      %v1066 = vrsqrt.pop %v1050
      %v1067 = vrsqrt.pop %v1051
      %v1068 = vrsqrt.pop %v1052
      %v1069 = vrsqrt.pop %v1053
      %v1070 = vrsqrt.pop %v1054
      %v1071 = vrsqrt.pop %v1055
      %v1072 = vrsqrt.pop %v1056
      %v1073 = vrsqrt.pop %v1057
      %v1074 = vrsqrt.pop %v1058
      %v1075 = vrsqrt.pop %v1059
      %v1076 = vrsqrt.pop %v1060
      %v1077 = vmul.f32 %v949, %v1061
      %v1078 = vmul.f32 %v950, %v1062
      %v1079 = vmul.f32 %v951, %v1063
      %v1080 = vmul.f32 %v952, %v1064
      %v1081 = vmul.f32 %v953, %v1065
      %v1082 = vmul.f32 %v954, %v1066
      %v1083 = vmul.f32 %v955, %v1067
      %v1084 = vmul.f32 %v956, %v1068
      %v1085 = vmul.f32 %v957, %v1069
      %v1086 = vmul.f32 %v958, %v1070
      %v1087 = vmul.f32 %v959, %v1071
      %v1088 = vmul.f32 %v960, %v1072
      %v1089 = vmul.f32 %v961, %v1073
      %v1090 = vmul.f32 %v962, %v1074
      %v1091 = vmul.f32 %v963, %v1075
      %v1092 = vmul.f32 %v964, %v1076
      %v1093 = vld [vmem:[%s4 + $0x3] sm:$0x1]
      %v1094 = vlaneseq
      %v1095 = vshrl.u32 %v1094, 7
      %v1096 = vsub.s32 0, %v1095
      %v1097 = vrot.slane %v1093, %v1096
      %v1098 = vmul.f32 %v1077, %v1097
      %v1099 = vmul.f32 %v1078, %v1097
      %v1100 = vmul.f32 %v1079, %v1097
      %v1101 = vmul.f32 %v1080, %v1097
      %v1102 = vmul.f32 %v1081, %v1097
      %v1103 = vmul.f32 %v1082, %v1097
      %v1104 = vmul.f32 %v1083, %v1097
      %v1105 = vmul.f32 %v1084, %v1097
      %v1106 = vmul.f32 %v1085, %v1097
      %v1107 = vmul.f32 %v1086, %v1097
      %v1108 = vmul.f32 %v1087, %v1097
      %v1109 = vmul.f32 %v1088, %v1097
      %v1110 = vmul.f32 %v1089, %v1097
      %v1111 = vmul.f32 %v1090, %v1097
      %v1112 = vmul.f32 %v1091, %v1097
      %v1113 = vmul.f32 %v1092, %v1097
      %v1114 = vld [vmem:[%s4 + $0x5] sm:$0x1]
      %v1115 = vlaneseq
      %v1116 = vshrl.u32 %v1115, 7
      %v1117 = vsub.s32 0, %v1116
      %v1118 = vrot.slane %v1114, %v1117
      %v1119 = vadd.f32 %v1098, %v1118
      %v1120 = vadd.f32 %v1099, %v1118
      %v1121 = vadd.f32 %v1100, %v1118
      %v1122 = vadd.f32 %v1101, %v1118
      %v1123 = vadd.f32 %v1102, %v1118
      %v1124 = vadd.f32 %v1103, %v1118
      %v1125 = vadd.f32 %v1104, %v1118
      %v1126 = vadd.f32 %v1105, %v1118
      %v1127 = vadd.f32 %v1106, %v1118
      %v1128 = vadd.f32 %v1107, %v1118
      %v1129 = vadd.f32 %v1108, %v1118
      %v1130 = vadd.f32 %v1109, %v1118
      %v1131 = vadd.f32 %v1110, %v1118
      %v1132 = vadd.f32 %v1111, %v1118
      %v1133 = vadd.f32 %v1112, %v1118
      %v1134 = vadd.f32 %v1113, %v1118
      %v1135 = vadd.f32 %v1119, %v458
      %v1136 = vadd.f32 %v1120, %v463
      %v1137 = vadd.f32 %v1121, %v468
      %v1138 = vadd.f32 %v1122, %v473
      %v1139 = vadd.f32 %v1123, %v478
      %v1140 = vadd.f32 %v1124, %v483
      %v1141 = vadd.f32 %v1125, %v488
      %v1142 = vadd.f32 %v1126, %v493
      %v1143 = vadd.f32 %v1127, %v498
      %v1144 = vadd.f32 %v1128, %v503
      %v1145 = vadd.f32 %v1129, %v508
      %v1146 = vadd.f32 %v1130, %v513
      %v1147 = vadd.f32 %v1131, %v518
      %v1148 = vadd.f32 %v1132, %v523
      %v1149 = vadd.f32 %v1133, %v528
      %v1150 = vadd.f32 %v1134, %v533
      %v1151 = vmax.f32 %v1135, 0.0
      %v1152 = vmax.f32 %v1136, 0.0
      %v1153 = vmax.f32 %v1137, 0.0
      %v1154 = vmax.f32 %v1138, 0.0
      %v1155 = vmax.f32 %v1139, 0.0
      %v1156 = vmax.f32 %v1140, 0.0
      %v1157 = vmax.f32 %v1141, 0.0
      %v1158 = vmax.f32 %v1142, 0.0
      %v1159 = vmax.f32 %v1143, 0.0
      %v1160 = vmax.f32 %v1144, 0.0
      %v1161 = vmax.f32 %v1145, 0.0
      %v1162 = vmax.f32 %v1146, 0.0
      %v1163 = vmax.f32 %v1147, 0.0
      %v1164 = vmax.f32 %v1148, 0.0
      %v1165 = vmax.f32 %v1149, 0.0
      %v1166 = vmax.f32 %v1150, 0.0
      %1167 = vmatprep.subr.mxu0 0.0
      %1168 = vmatpush1.msra.mxu0 %v1151
      %1169 = vmatprep.subr.mxu0 0.0
      %1170 = vmatpush1.msra.mxu0 %v1152
      %1171 = vmatprep.subr.mxu0 0.0
      %1172 = vmatpush1.msra.mxu0 %v1153
      %1173 = vmatprep.subr.mxu0 0.0
      %1174 = vmatpush1.msra.mxu0 %v1154
      %1175 = vmatprep.subr.mxu0 0.0
      %1176 = vmatpush1.msra.mxu0 %v1155
      %1177 = vmatprep.subr.mxu0 0.0
      %1178 = vmatpush1.msra.mxu0 %v1156
      %1179 = vmatprep.subr.mxu0 0.0
      %1180 = vmatpush1.msra.mxu0 %v1157
      %1181 = vmatprep.subr.mxu0 0.0
      %1182 = vmatpush1.msra.mxu0 %v1158
      %1183 = vmatprep.subr.mxu0 0.0
      %1184 = vmatpush1.msra.mxu0 %v1159
      %1185 = vmatprep.subr.mxu0 0.0
      %1186 = vmatpush1.msra.mxu0 %v1160
      %1187 = vmatprep.subr.mxu0 0.0
      %1188 = vmatpush1.msra.mxu0 %v1161
      %1189 = vmatprep.subr.mxu0 0.0
      %1190 = vmatpush1.msra.mxu0 %v1162
      %1191 = vmatprep.subr.mxu0 0.0
      %1192 = vmatpush1.msra.mxu0 %v1163
      %1193 = vmatprep.subr.mxu0 0.0
      %1194 = vmatpush1.msra.mxu0 %v1164
      %1195 = vmatprep.subr.mxu0 0.0
      %1196 = vmatpush1.msra.mxu0 %v1165
      %1197 = vmatprep.subr.mxu0 0.0
      %1198 = vmatpush1.msra.mxu0 %v1166
      %1199 = vmatprep.subr.mxu0 0.0
      %1200 = vmatpush1.msra.mxu0 0.0
      %1201 = vmatprep.subr.mxu0 0.0
      %1202 = vmatpush1.msra.mxu0 0.0
      %1203 = vmatprep.subr.mxu0 0.0
      %1204 = vmatpush1.msra.mxu0 0.0
      %1205 = vmatprep.subr.mxu0 0.0
      %1206 = vmatpush1.msra.mxu0 0.0
      %1207 = vmatprep.subr.mxu0 0.0
      %1208 = vmatpush1.msra.mxu0 0.0
      %1209 = vmatprep.subr.mxu0 0.0
      %1210 = vmatpush1.msra.mxu0 0.0
      %1211 = vmatprep.subr.mxu0 0.0
      %1212 = vmatpush1.msra.mxu0 0.0
      %1213 = vmatprep.subr.mxu0 0.0
      %1214 = vmatpush1.msra.mxu0 0.0
      %1215 = vmatprep.subr.mxu0 0.0
      %1216 = vmatpush1.msra.mxu0 0.0
      %1217 = vmatprep.subr.mxu0 0.0
      %1218 = vmatpush1.msra.mxu0 0.0
      %1219 = vmatprep.subr.mxu0 0.0
      %1220 = vmatpush1.msra.mxu0 0.0
      %1221 = vmatprep.subr.mxu0 0.0
      %1222 = vmatpush1.msra.mxu0 0.0
      %1223 = vmatprep.subr.mxu0 0.0
      %1224 = vmatpush1.msra.mxu0 0.0
      %1225 = vmatprep.subr.mxu0 0.0
      %1226 = vmatpush1.msra.mxu0 0.0
      %1227 = vmatprep.subr.mxu0 0.0
      %1228 = vmatpush1.msra.mxu0 0.0
      %1229 = vmatprep.subr.mxu0 0.0
      %1230 = vmatpush1.msra.mxu0 0.0
      %1231 = vmatprep.mubr.f32.mxu0 0.0
      %1232 = vmatmul.mubr.f32.gmra.mrb[0].mxu0 %v317
      %v1233 = vpop.f32.mrb[0].mxu0
      %v1234 = vadd.f32 0.0, %v1233
      %v1235 = vpop.f32.mrb[0].mxu0
      %1236 = vmatprep.mubr.f32.mxu0 0.0
      %1237 = vmatmul.mubr.f32.gmra.mrb[0].mxu0 %v318
      %v1238 = vpop.f32.mrb[0].mxu0
      %v1239 = vadd.f32 0.0, %v1238
      %v1240 = vpop.f32.mrb[0].mxu0
      %1241 = vmatprep.mubr.f32.mxu0 0.0
      %1242 = vmatmul.mubr.f32.gmra.mrb[0].mxu0 %v319
      %v1243 = vpop.f32.mrb[0].mxu0
      %v1244 = vadd.f32 0.0, %v1243
      %v1245 = vpop.f32.mrb[0].mxu0
      %1246 = vmatprep.mubr.f32.mxu0 0.0
      %1247 = vmatmul.mubr.f32.gmra.mrb[0].mxu0 %v320
      %v1248 = vpop.f32.mrb[0].mxu0
      %v1249 = vadd.f32 0.0, %v1248
      %v1250 = vpop.f32.mrb[0].mxu0
      %1251 = vmatprep.mubr.f32.mxu0 0.0
      %1252 = vmatmul.mubr.f32.gmra.mrb[0].mxu0 %v321
      %v1253 = vpop.f32.mrb[0].mxu0
      %v1254 = vadd.f32 0.0, %v1253
      %v1255 = vpop.f32.mrb[0].mxu0
      %1256 = vmatprep.mubr.f32.mxu0 0.0
      %1257 = vmatmul.mubr.f32.gmra.mrb[0].mxu0 %v322
      %v1258 = vpop.f32.mrb[0].mxu0
      %v1259 = vadd.f32 0.0, %v1258
      %v1260 = vpop.f32.mrb[0].mxu0
      %1261 = vmatprep.mubr.f32.mxu0 0.0
      %1262 = vmatmul.mubr.f32.gmra.mrb[0].mxu0 %v323
      %v1263 = vpop.f32.mrb[0].mxu0
      %v1264 = vadd.f32 0.0, %v1263
      %v1265 = vpop.f32.mrb[0].mxu0
      %1266 = vmatprep.mubr.f32.mxu0 0.0
      %1267 = vmatmul.mubr.f32.gmra.mrb[0].mxu0 %v324
      %v1268 = vpop.f32.mrb[0].mxu0
      %v1269 = vadd.f32 0.0, %v1268
      %v1270 = vpop.f32.mrb[0].mxu0
      %1271 = vmatprep.mubr.f32.mxu0 0.0
      %1272 = vmatmul.mubr.f32.gmra.mrb[0].mxu0 %v325
      %v1273 = vpop.f32.mrb[0].mxu0
      %v1274 = vadd.f32 0.0, %v1273
      %v1275 = vpop.f32.mrb[0].mxu0
      %1276 = vmatprep.mubr.f32.mxu0 0.0
      %1277 = vmatmul.mubr.f32.gmra.mrb[0].mxu0 %v326
      %v1278 = vpop.f32.mrb[0].mxu0
      %v1279 = vadd.f32 0.0, %v1278
      %v1280 = vpop.f32.mrb[0].mxu0
      %1281 = vmatprep.mubr.f32.mxu0 0.0
      %1282 = vmatmul.mubr.f32.gmra.mrb[0].mxu0 %v327
      %v1283 = vpop.f32.mrb[0].mxu0
      %v1284 = vadd.f32 0.0, %v1283
      %v1285 = vpop.f32.mrb[0].mxu0
      %1286 = vmatprep.mubr.f32.mxu0 0.0
      %1287 = vmatmul.mubr.f32.gmra.mrb[0].mxu0 %v328
      %v1288 = vpop.f32.mrb[0].mxu0
      %v1289 = vadd.f32 0.0, %v1288
      %v1290 = vpop.f32.mrb[0].mxu0
      %1291 = vmatprep.mubr.f32.mxu0 0.0
      %1292 = vmatmul.mubr.f32.gmra.mrb[0].mxu0 %v329
      %v1293 = vpop.f32.mrb[0].mxu0
      %v1294 = vadd.f32 0.0, %v1293
      %v1295 = vpop.f32.mrb[0].mxu0
      %1296 = vmatprep.mubr.f32.mxu0 0.0
      %1297 = vmatmul.mubr.f32.gmra.mrb[0].mxu0 %v330
      %v1298 = vpop.f32.mrb[0].mxu0
      %v1299 = vadd.f32 0.0, %v1298
      %v1300 = vpop.f32.mrb[0].mxu0
      %1301 = vmatprep.mubr.f32.mxu0 0.0
      %1302 = vmatmul.mubr.f32.gmra.mrb[0].mxu0 %v331
      %v1303 = vpop.f32.mrb[0].mxu0
      %v1304 = vadd.f32 0.0, %v1303
      %v1305 = vpop.f32.mrb[0].mxu0
      %1306 = vmatprep.mubr.f32.mxu0 0.0
      %1307 = vmatmul.mubr.f32.gmra.mrb[0].mxu0 %v332
      %v1308 = vpop.f32.mrb[0].mxu0
      %v1309 = vadd.f32 0.0, %v1308
      %v1310 = vpop.f32.mrb[0].mxu0
      %1311 = vdwg.mxu0
      %s1312 = scalar_lea.vmem %s3, 64
      %v1313 = vld [vmem:[%s1312] sm:$0xff]
      %v1314 = vld [vmem:[%s1312 + $0x8] sm:$0xff]
      %v1315 = vld [vmem:[%s1312 + $0x10] sm:$0xff]
      %v1316 = vld [vmem:[%s1312 + $0x18] sm:$0xff]
      %v1317 = vld [vmem:[%s4 + $0x2] sm:$0x1]
      %v1318 = vlaneseq
      %v1319 = vshrl.u32 %v1318, 7
      %v1320 = vsub.s32 0, %v1319
      %v1321 = vrot.slane %v1317, %v1320
      %v1323 = vsel %vm342, %v1234, 0
      %v1326 = vsel %vm342, %v1239, 0
      %v1329 = vsel %vm342, %v1244, 0
      %v1332 = vsel %vm342, %v1249, 0
      %v1335 = vsel %vm342, %v1254, 0
      %v1338 = vsel %vm342, %v1259, 0
      %v1341 = vsel %vm342, %v1264, 0
      %v1344 = vsel %vm342, %v1269, 0
      %v1347 = vsel %vm342, %v1274, 0
      %v1350 = vsel %vm342, %v1279, 0
      %v1353 = vsel %vm342, %v1284, 0
      %v1356 = vsel %vm342, %v1289, 0
      %v1359 = vsel %vm342, %v1294, 0
      %v1362 = vsel %vm342, %v1299, 0
      %v1365 = vsel %vm342, %v1304, 0
      %v1368 = vsel %vm342, %v1309, 0
      %1370 = vmatprep.subr.mxu0 0.0
      %1371 = vmatpush1.msra.mxu0 %v1313
      %1372 = vmatprep.subr.mxu0 0.0
      %1373 = vmatpush1.msra.mxu0 %v1314
      %1374 = vmatprep.subr.mxu0 0.0
      %1375 = vmatpush1.msra.mxu0 %v1315
      %1376 = vmatprep.subr.mxu0 0.0
      %1377 = vmatpush1.msra.mxu0 %v1316
      %1378 = vmatprep.subr.mxu0 0.0
      %1379 = vmatpush1.msra.mxu0 0.0
      %1380 = vmatprep.subr.mxu0 0.0
      %1381 = vmatpush1.msra.mxu0 0.0
      %1382 = vmatprep.subr.mxu0 0.0
      %1383 = vmatpush1.msra.mxu0 0.0
      %1384 = vmatprep.subr.mxu0 0.0
      %1385 = vmatpush1.msra.mxu0 0.0
      %1386 = vmatprep.subr.mxu0 0.0
      %1387 = vmatpush1.msra.mxu0 0.0
      %1388 = vmatprep.subr.mxu0 0.0
      %1389 = vmatpush1.msra.mxu0 0.0
      %1390 = vmatprep.subr.mxu0 0.0
      %1391 = vmatpush1.msra.mxu0 0.0
      %1392 = vmatprep.subr.mxu0 0.0
      %1393 = vmatpush1.msra.mxu0 0.0
      %1394 = vmatprep.subr.mxu0 0.0
      %1395 = vmatpush1.msra.mxu0 0.0
      %1396 = vmatprep.subr.mxu0 0.0
      %1397 = vmatpush1.msra.mxu0 0.0
      %1398 = vmatprep.subr.mxu0 0.0
      %1399 = vmatpush1.msra.mxu0 0.0
      %1400 = vmatprep.subr.mxu0 0.0
      %1401 = vmatpush1.msra.mxu0 0.0
      %1402 = vmatprep.subr.mxu0 0.0
      %1403 = vmatpush1.msra.mxu0 0.0
      %1404 = vmatprep.subr.mxu0 0.0
      %1405 = vmatpush1.msra.mxu0 0.0
      %1406 = vmatprep.subr.mxu0 0.0
      %1407 = vmatpush1.msra.mxu0 0.0
      %1408 = vmatprep.subr.mxu0 0.0
      %1409 = vmatpush1.msra.mxu0 0.0
      %1410 = vmatprep.subr.mxu0 0.0
      %1411 = vmatpush1.msra.mxu0 0.0
      %1412 = vmatprep.subr.mxu0 0.0
      %1413 = vmatpush1.msra.mxu0 0.0
      %1414 = vmatprep.subr.mxu0 0.0
      %1415 = vmatpush1.msra.mxu0 0.0
      %1416 = vmatprep.subr.mxu0 0.0
      %1417 = vmatpush1.msra.mxu0 0.0
      %1418 = vmatprep.subr.mxu0 0.0
      %1419 = vmatpush1.msra.mxu0 0.0
      %1420 = vmatprep.subr.mxu0 0.0
      %1421 = vmatpush1.msra.mxu0 0.0
      %1422 = vmatprep.subr.mxu0 0.0
      %1423 = vmatpush1.msra.mxu0 0.0
      %1424 = vmatprep.subr.mxu0 0.0
      %1425 = vmatpush1.msra.mxu0 0.0
      %1426 = vmatprep.subr.mxu0 0.0
      %1427 = vmatpush1.msra.mxu0 0.0
      %1428 = vmatprep.subr.mxu0 0.0
      %1429 = vmatpush1.msra.mxu0 0.0
      %1430 = vmatprep.subr.mxu0 0.0
      %1431 = vmatpush1.msra.mxu0 0.0
      %1432 = vmatprep.subr.mxu0 0.0
      %1433 = vmatpush1.msra.mxu0 0.0
      %1434 = vmatprep.mubr.f32.mxu0 0.0
      %1435 = vmatmul.mubr.f32.gmra.mrb[0].mxu0 %v1323
      %v1436 = vpop.f32.mrb[0].mxu0
      %v1437 = vadd.f32 %v1321, %v1436
      %v1438 = vpop.f32.mrb[0].mxu0
      %1439 = vmatprep.mubr.f32.mxu0 0.0
      %1440 = vmatmul.mubr.f32.gmra.mrb[0].mxu0 %v1326
      %v1441 = vpop.f32.mrb[0].mxu0
      %v1442 = vadd.f32 %v1321, %v1441
      %v1443 = vpop.f32.mrb[0].mxu0
      %1444 = vmatprep.mubr.f32.mxu0 0.0
      %1445 = vmatmul.mubr.f32.gmra.mrb[0].mxu0 %v1329
      %v1446 = vpop.f32.mrb[0].mxu0
      %v1447 = vadd.f32 %v1321, %v1446
      %v1448 = vpop.f32.mrb[0].mxu0
      %1449 = vmatprep.mubr.f32.mxu0 0.0
      %1450 = vmatmul.mubr.f32.gmra.mrb[0].mxu0 %v1332
      %v1451 = vpop.f32.mrb[0].mxu0
      %v1452 = vadd.f32 %v1321, %v1451
      %v1453 = vpop.f32.mrb[0].mxu0
      %1454 = vmatprep.mubr.f32.mxu0 0.0
      %1455 = vmatmul.mubr.f32.gmra.mrb[0].mxu0 %v1335
      %v1456 = vpop.f32.mrb[0].mxu0
      %v1457 = vadd.f32 %v1321, %v1456
      %v1458 = vpop.f32.mrb[0].mxu0
      %1459 = vmatprep.mubr.f32.mxu0 0.0
      %1460 = vmatmul.mubr.f32.gmra.mrb[0].mxu0 %v1338
      %v1461 = vpop.f32.mrb[0].mxu0
      %v1462 = vadd.f32 %v1321, %v1461
      %v1463 = vpop.f32.mrb[0].mxu0
      %1464 = vmatprep.mubr.f32.mxu0 0.0
      %1465 = vmatmul.mubr.f32.gmra.mrb[0].mxu0 %v1341
      %v1466 = vpop.f32.mrb[0].mxu0
      %v1467 = vadd.f32 %v1321, %v1466
      %v1468 = vpop.f32.mrb[0].mxu0
      %1469 = vmatprep.mubr.f32.mxu0 0.0
      %1470 = vmatmul.mubr.f32.gmra.mrb[0].mxu0 %v1344
      %v1471 = vpop.f32.mrb[0].mxu0
      %v1472 = vadd.f32 %v1321, %v1471
      %v1473 = vpop.f32.mrb[0].mxu0
      %1474 = vmatprep.mubr.f32.mxu0 0.0
      %1475 = vmatmul.mubr.f32.gmra.mrb[0].mxu0 %v1347
      %v1476 = vpop.f32.mrb[0].mxu0
      %v1477 = vadd.f32 %v1321, %v1476
      %v1478 = vpop.f32.mrb[0].mxu0
      %1479 = vmatprep.mubr.f32.mxu0 0.0
      %1480 = vmatmul.mubr.f32.gmra.mrb[0].mxu0 %v1350
      %v1481 = vpop.f32.mrb[0].mxu0
      %v1482 = vadd.f32 %v1321, %v1481
      %v1483 = vpop.f32.mrb[0].mxu0
      %1484 = vmatprep.mubr.f32.mxu0 0.0
      %1485 = vmatmul.mubr.f32.gmra.mrb[0].mxu0 %v1353
      %v1486 = vpop.f32.mrb[0].mxu0
      %v1487 = vadd.f32 %v1321, %v1486
      %v1488 = vpop.f32.mrb[0].mxu0
      %1489 = vmatprep.mubr.f32.mxu0 0.0
      %1490 = vmatmul.mubr.f32.gmra.mrb[0].mxu0 %v1356
      %v1491 = vpop.f32.mrb[0].mxu0
      %v1492 = vadd.f32 %v1321, %v1491
      %v1493 = vpop.f32.mrb[0].mxu0
      %1494 = vmatprep.mubr.f32.mxu0 0.0
      %1495 = vmatmul.mubr.f32.gmra.mrb[0].mxu0 %v1359
      %v1496 = vpop.f32.mrb[0].mxu0
      %v1497 = vadd.f32 %v1321, %v1496
      %v1498 = vpop.f32.mrb[0].mxu0
      %1499 = vmatprep.mubr.f32.mxu0 0.0
      %1500 = vmatmul.mubr.f32.gmra.mrb[0].mxu0 %v1362
      %v1501 = vpop.f32.mrb[0].mxu0
      %v1502 = vadd.f32 %v1321, %v1501
      %v1503 = vpop.f32.mrb[0].mxu0
      %1504 = vmatprep.mubr.f32.mxu0 0.0
      %1505 = vmatmul.mubr.f32.gmra.mrb[0].mxu0 %v1365
      %v1506 = vpop.f32.mrb[0].mxu0
      %v1507 = vadd.f32 %v1321, %v1506
      %v1508 = vpop.f32.mrb[0].mxu0
      %1509 = vmatprep.mubr.f32.mxu0 0.0
      %1510 = vmatmul.mubr.f32.gmra.mrb[0].mxu0 %v1368
      %v1511 = vpop.f32.mrb[0].mxu0
      %v1512 = vadd.f32 %v1321, %v1511
      %v1513 = vpop.f32.mrb[0].mxu0
      %1514 = vdwg.mxu0
      %v1515 = vsel %vm342, %v1437, 0.0
      %1516 = vadd.xlane.f32.xlu0 %v1515
      %v1517 = vpop.xlane.xlu0 %1516
      %v1518 = vsel %vm342, %v1442, 0.0
      %1519 = vadd.xlane.f32.xlu0 %v1518
      %v1520 = vpop.xlane.xlu0 %1519
      %v1521 = vsel %vm342, %v1447, 0.0
      %1522 = vadd.xlane.f32.xlu0 %v1521
      %v1523 = vpop.xlane.xlu0 %1522
      %v1524 = vsel %vm342, %v1452, 0.0
      %1525 = vadd.xlane.f32.xlu0 %v1524
      %v1526 = vpop.xlane.xlu0 %1525
      %v1527 = vsel %vm342, %v1457, 0.0
      %1528 = vadd.xlane.f32.xlu0 %v1527
      %v1529 = vpop.xlane.xlu0 %1528
      %v1530 = vsel %vm342, %v1462, 0.0
      %1531 = vadd.xlane.f32.xlu0 %v1530
      %v1532 = vpop.xlane.xlu0 %1531
      %v1533 = vsel %vm342, %v1467, 0.0
      %1534 = vadd.xlane.f32.xlu0 %v1533
      %v1535 = vpop.xlane.xlu0 %1534
      %v1536 = vsel %vm342, %v1472, 0.0
      %1537 = vadd.xlane.f32.xlu0 %v1536
      %v1538 = vpop.xlane.xlu0 %1537
      %v1539 = vsel %vm342, %v1477, 0.0
      %1540 = vadd.xlane.f32.xlu0 %v1539
      %v1541 = vpop.xlane.xlu0 %1540
      %v1542 = vsel %vm342, %v1482, 0.0
      %1543 = vadd.xlane.f32.xlu0 %v1542
      %v1544 = vpop.xlane.xlu0 %1543
      %v1545 = vsel %vm342, %v1487, 0.0
      %1546 = vadd.xlane.f32.xlu0 %v1545
      %v1547 = vpop.xlane.xlu0 %1546
      %v1548 = vsel %vm342, %v1492, 0.0
      %1549 = vadd.xlane.f32.xlu0 %v1548
      %v1550 = vpop.xlane.xlu0 %1549
      %v1551 = vsel %vm342, %v1497, 0.0
      %1552 = vadd.xlane.f32.xlu0 %v1551
      %v1553 = vpop.xlane.xlu0 %1552
      %v1554 = vsel %vm342, %v1502, 0.0
      %1555 = vadd.xlane.f32.xlu0 %v1554
      %v1556 = vpop.xlane.xlu0 %1555
      %v1557 = vsel %vm342, %v1507, 0.0
      %1558 = vadd.xlane.f32.xlu0 %v1557
      %v1559 = vpop.xlane.xlu0 %1558
      %v1560 = vsel %vm342, %v1512, 0.0
      %1561 = vadd.xlane.f32.xlu0 %v1560
      %v1562 = vpop.xlane.xlu0 %1561
      %v1563 = vmul.f32 %v1517, %v932
      %v1564 = vmul.f32 %v1520, %v932
      %v1565 = vmul.f32 %v1523, %v932
      %v1566 = vmul.f32 %v1526, %v932
      %v1567 = vmul.f32 %v1529, %v932
      %v1568 = vmul.f32 %v1532, %v932
      %v1569 = vmul.f32 %v1535, %v932
      %v1570 = vmul.f32 %v1538, %v932
      %v1571 = vmul.f32 %v1541, %v932
      %v1572 = vmul.f32 %v1544, %v932
      %v1573 = vmul.f32 %v1547, %v932
      %v1574 = vmul.f32 %v1550, %v932
      %v1575 = vmul.f32 %v1553, %v932
      %v1576 = vmul.f32 %v1556, %v932
      %v1577 = vmul.f32 %v1559, %v932
      %v1578 = vmul.f32 %v1562, %v932
      %v1579 = vsub.f32 %v1437, %v1563
      %v1580 = vsub.f32 %v1442, %v1564
      %v1581 = vsub.f32 %v1447, %v1565
      %v1582 = vsub.f32 %v1452, %v1566
      %v1583 = vsub.f32 %v1457, %v1567
      %v1584 = vsub.f32 %v1462, %v1568
      %v1585 = vsub.f32 %v1467, %v1569
      %v1586 = vsub.f32 %v1472, %v1570
      %v1587 = vsub.f32 %v1477, %v1571
      %v1588 = vsub.f32 %v1482, %v1572
      %v1589 = vsub.f32 %v1487, %v1573
      %v1590 = vsub.f32 %v1492, %v1574
      %v1591 = vsub.f32 %v1497, %v1575
      %v1592 = vsub.f32 %v1502, %v1576
      %v1593 = vsub.f32 %v1507, %v1577
      %v1594 = vsub.f32 %v1512, %v1578
      %v1595 = vmul.f32 %v1579, %v1579
      %v1596 = vmul.f32 %v1580, %v1580
      %v1597 = vmul.f32 %v1581, %v1581
      %v1598 = vmul.f32 %v1582, %v1582
      %v1599 = vmul.f32 %v1583, %v1583
      %v1600 = vmul.f32 %v1584, %v1584
      %v1601 = vmul.f32 %v1585, %v1585
      %v1602 = vmul.f32 %v1586, %v1586
      %v1603 = vmul.f32 %v1587, %v1587
      %v1604 = vmul.f32 %v1588, %v1588
      %v1605 = vmul.f32 %v1589, %v1589
      %v1606 = vmul.f32 %v1590, %v1590
      %v1607 = vmul.f32 %v1591, %v1591
      %v1608 = vmul.f32 %v1592, %v1592
      %v1609 = vmul.f32 %v1593, %v1593
      %v1610 = vmul.f32 %v1594, %v1594
      %v1611 = vsel %vm342, %v1595, 0.0
      %1612 = vadd.xlane.f32.xlu0 %v1611
      %v1613 = vpop.xlane.xlu0 %1612
      %v1614 = vsel %vm342, %v1596, 0.0
      %1615 = vadd.xlane.f32.xlu0 %v1614
      %v1616 = vpop.xlane.xlu0 %1615
      %v1617 = vsel %vm342, %v1597, 0.0
      %1618 = vadd.xlane.f32.xlu0 %v1617
      %v1619 = vpop.xlane.xlu0 %1618
      %v1620 = vsel %vm342, %v1598, 0.0
      %1621 = vadd.xlane.f32.xlu0 %v1620
      %v1622 = vpop.xlane.xlu0 %1621
      %v1623 = vsel %vm342, %v1599, 0.0
      %1624 = vadd.xlane.f32.xlu0 %v1623
      %v1625 = vpop.xlane.xlu0 %1624
      %v1626 = vsel %vm342, %v1600, 0.0
      %1627 = vadd.xlane.f32.xlu0 %v1626
      %v1628 = vpop.xlane.xlu0 %1627
      %v1629 = vsel %vm342, %v1601, 0.0
      %1630 = vadd.xlane.f32.xlu0 %v1629
      %v1631 = vpop.xlane.xlu0 %1630
      %v1632 = vsel %vm342, %v1602, 0.0
      %1633 = vadd.xlane.f32.xlu0 %v1632
      %v1634 = vpop.xlane.xlu0 %1633
      %v1635 = vsel %vm342, %v1603, 0.0
      %1636 = vadd.xlane.f32.xlu0 %v1635
      %v1637 = vpop.xlane.xlu0 %1636
      %v1638 = vsel %vm342, %v1604, 0.0
      %1639 = vadd.xlane.f32.xlu0 %v1638
      %v1640 = vpop.xlane.xlu0 %1639
      %v1641 = vsel %vm342, %v1605, 0.0
      %1642 = vadd.xlane.f32.xlu0 %v1641
      %v1643 = vpop.xlane.xlu0 %1642
      %v1644 = vsel %vm342, %v1606, 0.0
      %1645 = vadd.xlane.f32.xlu0 %v1644
      %v1646 = vpop.xlane.xlu0 %1645
      %v1647 = vsel %vm342, %v1607, 0.0
      %1648 = vadd.xlane.f32.xlu0 %v1647
      %v1649 = vpop.xlane.xlu0 %1648
      %v1650 = vsel %vm342, %v1608, 0.0
      %1651 = vadd.xlane.f32.xlu0 %v1650
      %v1652 = vpop.xlane.xlu0 %1651
      %v1653 = vsel %vm342, %v1609, 0.0
      %1654 = vadd.xlane.f32.xlu0 %v1653
      %v1655 = vpop.xlane.xlu0 %1654
      %v1656 = vsel %vm342, %v1610, 0.0
      %1657 = vadd.xlane.f32.xlu0 %v1656
      %v1658 = vpop.xlane.xlu0 %1657
      %v1659 = vmul.f32 %v1613, %v932
      %v1660 = vmul.f32 %v1616, %v932
      %v1661 = vmul.f32 %v1619, %v932
      %v1662 = vmul.f32 %v1622, %v932
      %v1663 = vmul.f32 %v1625, %v932
      %v1664 = vmul.f32 %v1628, %v932
      %v1665 = vmul.f32 %v1631, %v932
      %v1666 = vmul.f32 %v1634, %v932
      %v1667 = vmul.f32 %v1637, %v932
      %v1668 = vmul.f32 %v1640, %v932
      %v1669 = vmul.f32 %v1643, %v932
      %v1670 = vmul.f32 %v1646, %v932
      %v1671 = vmul.f32 %v1649, %v932
      %v1672 = vmul.f32 %v1652, %v932
      %v1673 = vmul.f32 %v1655, %v932
      %v1674 = vmul.f32 %v1658, %v932
      %v1675 = vadd.f32 %v1659, 1e-05
      %v1676 = vadd.f32 %v1660, 1e-05
      %v1677 = vadd.f32 %v1661, 1e-05
      %v1678 = vadd.f32 %v1662, 1e-05
      %v1679 = vadd.f32 %v1663, 1e-05
      %v1680 = vadd.f32 %v1664, 1e-05
      %v1681 = vadd.f32 %v1665, 1e-05
      %v1682 = vadd.f32 %v1666, 1e-05
      %v1683 = vadd.f32 %v1667, 1e-05
      %v1684 = vadd.f32 %v1668, 1e-05
      %v1685 = vadd.f32 %v1669, 1e-05
      %v1686 = vadd.f32 %v1670, 1e-05
      %v1687 = vadd.f32 %v1671, 1e-05
      %v1688 = vadd.f32 %v1672, 1e-05
      %v1689 = vadd.f32 %v1673, 1e-05
      %v1690 = vadd.f32 %v1674, 1e-05
      %v1691 = vrsqrt.pop %v1675
      %v1692 = vrsqrt.pop %v1676
      %v1693 = vrsqrt.pop %v1677
      %v1694 = vrsqrt.pop %v1678
      %v1695 = vrsqrt.pop %v1679
      %v1696 = vrsqrt.pop %v1680
      %v1697 = vrsqrt.pop %v1681
      %v1698 = vrsqrt.pop %v1682
      %v1699 = vrsqrt.pop %v1683
      %v1700 = vrsqrt.pop %v1684
      %v1701 = vrsqrt.pop %v1685
      %v1702 = vrsqrt.pop %v1686
      %v1703 = vrsqrt.pop %v1687
      %v1704 = vrsqrt.pop %v1688
      %v1705 = vrsqrt.pop %v1689
      %v1706 = vrsqrt.pop %v1690
      %v1707 = vmul.f32 %v1579, %v1691
      %v1708 = vmul.f32 %v1580, %v1692
      %v1709 = vmul.f32 %v1581, %v1693
      %v1710 = vmul.f32 %v1582, %v1694
      %v1711 = vmul.f32 %v1583, %v1695
      %v1712 = vmul.f32 %v1584, %v1696
      %v1713 = vmul.f32 %v1585, %v1697
      %v1714 = vmul.f32 %v1586, %v1698
      %v1715 = vmul.f32 %v1587, %v1699
      %v1716 = vmul.f32 %v1588, %v1700
      %v1717 = vmul.f32 %v1589, %v1701
      %v1718 = vmul.f32 %v1590, %v1702
      %v1719 = vmul.f32 %v1591, %v1703
      %v1720 = vmul.f32 %v1592, %v1704
      %v1721 = vmul.f32 %v1593, %v1705
      %v1722 = vmul.f32 %v1594, %v1706
      %v1723 = vld [vmem:[%s4 + $0x4] sm:$0x1]
      %v1724 = vlaneseq
      %v1725 = vshrl.u32 %v1724, 7
      %v1726 = vsub.s32 0, %v1725
      %v1727 = vrot.slane %v1723, %v1726
      %v1728 = vmul.f32 %v1707, %v1727
      %v1729 = vmul.f32 %v1708, %v1727
      %v1730 = vmul.f32 %v1709, %v1727
      %v1731 = vmul.f32 %v1710, %v1727
      %v1732 = vmul.f32 %v1711, %v1727
      %v1733 = vmul.f32 %v1712, %v1727
      %v1734 = vmul.f32 %v1713, %v1727
      %v1735 = vmul.f32 %v1714, %v1727
      %v1736 = vmul.f32 %v1715, %v1727
      %v1737 = vmul.f32 %v1716, %v1727
      %v1738 = vmul.f32 %v1717, %v1727
      %v1739 = vmul.f32 %v1718, %v1727
      %v1740 = vmul.f32 %v1719, %v1727
      %v1741 = vmul.f32 %v1720, %v1727
      %v1742 = vmul.f32 %v1721, %v1727
      %v1743 = vmul.f32 %v1722, %v1727
      %v1744 = vld [vmem:[%s4 + $0x6] sm:$0x1]
      %v1745 = vlaneseq
      %v1746 = vshrl.u32 %v1745, 7
      %v1747 = vsub.s32 0, %v1746
      %v1748 = vrot.slane %v1744, %v1747
      %v1749 = vadd.f32 %v1728, %v1748
      %v1750 = vadd.f32 %v1729, %v1748
      %v1751 = vadd.f32 %v1730, %v1748
      %v1752 = vadd.f32 %v1731, %v1748
      %v1753 = vadd.f32 %v1732, %v1748
      %v1754 = vadd.f32 %v1733, %v1748
      %v1755 = vadd.f32 %v1734, %v1748
      %v1756 = vadd.f32 %v1735, %v1748
      %v1757 = vadd.f32 %v1736, %v1748
      %v1758 = vadd.f32 %v1737, %v1748
      %v1759 = vadd.f32 %v1738, %v1748
      %v1760 = vadd.f32 %v1739, %v1748
      %v1761 = vadd.f32 %v1740, %v1748
      %v1762 = vadd.f32 %v1741, %v1748
      %v1763 = vadd.f32 %v1742, %v1748
      %v1764 = vadd.f32 %v1743, %v1748
      %v1765 = vadd.f32 %v1749, %v458
      %v1766 = vadd.f32 %v1750, %v463
      %v1767 = vadd.f32 %v1751, %v468
      %v1768 = vadd.f32 %v1752, %v473
      %v1769 = vadd.f32 %v1753, %v478
      %v1770 = vadd.f32 %v1754, %v483
      %v1771 = vadd.f32 %v1755, %v488
      %v1772 = vadd.f32 %v1756, %v493
      %v1773 = vadd.f32 %v1757, %v498
      %v1774 = vadd.f32 %v1758, %v503
      %v1775 = vadd.f32 %v1759, %v508
      %v1776 = vadd.f32 %v1760, %v513
      %v1777 = vadd.f32 %v1761, %v518
      %v1778 = vadd.f32 %v1762, %v523
      %v1779 = vadd.f32 %v1763, %v528
      %v1780 = vadd.f32 %v1764, %v533
      %v1781 = vmax.f32 %v1765, 0.0
      %v1782 = vmax.f32 %v1766, 0.0
      %v1783 = vmax.f32 %v1767, 0.0
      %v1784 = vmax.f32 %v1768, 0.0
      %v1785 = vmax.f32 %v1769, 0.0
      %v1786 = vmax.f32 %v1770, 0.0
      %v1787 = vmax.f32 %v1771, 0.0
      %v1788 = vmax.f32 %v1772, 0.0
      %v1789 = vmax.f32 %v1773, 0.0
      %v1790 = vmax.f32 %v1774, 0.0
      %v1791 = vmax.f32 %v1775, 0.0
      %v1792 = vmax.f32 %v1776, 0.0
      %v1793 = vmax.f32 %v1777, 0.0
      %v1794 = vmax.f32 %v1778, 0.0
      %v1795 = vmax.f32 %v1779, 0.0
      %v1796 = vmax.f32 %v1780, 0.0
      %v1797 = vld [vmem:[%s2] sm:$0xff]
      %1798 = vmatprep.subr.mxu0 0.0
      %1799 = vmatpush1.msra.mxu0 %v1781
      %1800 = vmatprep.subr.mxu0 0.0
      %1801 = vmatpush1.msra.mxu0 %v1782
      %1802 = vmatprep.subr.mxu0 0.0
      %1803 = vmatpush1.msra.mxu0 %v1783
      %1804 = vmatprep.subr.mxu0 0.0
      %1805 = vmatpush1.msra.mxu0 %v1784
      %1806 = vmatprep.subr.mxu0 0.0
      %1807 = vmatpush1.msra.mxu0 %v1785
      %1808 = vmatprep.subr.mxu0 0.0
      %1809 = vmatpush1.msra.mxu0 %v1786
      %1810 = vmatprep.subr.mxu0 0.0
      %1811 = vmatpush1.msra.mxu0 %v1787
      %1812 = vmatprep.subr.mxu0 0.0
      %1813 = vmatpush1.msra.mxu0 %v1788
      %1814 = vmatprep.subr.mxu0 0.0
      %1815 = vmatpush1.msra.mxu0 %v1789
      %1816 = vmatprep.subr.mxu0 0.0
      %1817 = vmatpush1.msra.mxu0 %v1790
      %1818 = vmatprep.subr.mxu0 0.0
      %1819 = vmatpush1.msra.mxu0 %v1791
      %1820 = vmatprep.subr.mxu0 0.0
      %1821 = vmatpush1.msra.mxu0 %v1792
      %1822 = vmatprep.subr.mxu0 0.0
      %1823 = vmatpush1.msra.mxu0 %v1793
      %1824 = vmatprep.subr.mxu0 0.0
      %1825 = vmatpush1.msra.mxu0 %v1794
      %1826 = vmatprep.subr.mxu0 0.0
      %1827 = vmatpush1.msra.mxu0 %v1795
      %1828 = vmatprep.subr.mxu0 0.0
      %1829 = vmatpush1.msra.mxu0 %v1796
      %1830 = vmatprep.subr.mxu0 0.0
      %1831 = vmatpush1.msra.mxu0 0.0
      %1832 = vmatprep.subr.mxu0 0.0
      %1833 = vmatpush1.msra.mxu0 0.0
      %1834 = vmatprep.subr.mxu0 0.0
      %1835 = vmatpush1.msra.mxu0 0.0
      %1836 = vmatprep.subr.mxu0 0.0
      %1837 = vmatpush1.msra.mxu0 0.0
      %1838 = vmatprep.subr.mxu0 0.0
      %1839 = vmatpush1.msra.mxu0 0.0
      %1840 = vmatprep.subr.mxu0 0.0
      %1841 = vmatpush1.msra.mxu0 0.0
      %1842 = vmatprep.subr.mxu0 0.0
      %1843 = vmatpush1.msra.mxu0 0.0
      %1844 = vmatprep.subr.mxu0 0.0
      %1845 = vmatpush1.msra.mxu0 0.0
      %1846 = vmatprep.subr.mxu0 0.0
      %1847 = vmatpush1.msra.mxu0 0.0
      %1848 = vmatprep.subr.mxu0 0.0
      %1849 = vmatpush1.msra.mxu0 0.0
      %1850 = vmatprep.subr.mxu0 0.0
      %1851 = vmatpush1.msra.mxu0 0.0
      %1852 = vmatprep.subr.mxu0 0.0
      %1853 = vmatpush1.msra.mxu0 0.0
      %1854 = vmatprep.subr.mxu0 0.0
      %1855 = vmatpush1.msra.mxu0 0.0
      %1856 = vmatprep.subr.mxu0 0.0
      %1857 = vmatpush1.msra.mxu0 0.0
      %1858 = vmatprep.subr.mxu0 0.0
      %1859 = vmatpush1.msra.mxu0 0.0
      %1860 = vmatprep.subr.mxu0 0.0
      %1861 = vmatpush1.msra.mxu0 0.0
      %1862 = vmatprep.mubr.f32.mxu0 0.0
      %1863 = vmatmul.mubr.f32.gmra.mrb[0].mxu0 %v1797
      %v1864 = vpop.f32.mrb[0].mxu0
      %v1865 = vadd.f32 0.0, %v1864
      %v1866 = vpop.f32.mrb[0].mxu0
      %1867 = vdwg.mxu0
      %s1868 = scalar_lea.vmem %s3, 96
      %v1869 = vld [vmem:[%s1868] sm:$0xff]
      %v1870 = vld [vmem:[%s1868 + $0x8] sm:$0xff]
      %v1871 = vld [vmem:[%s1868 + $0x10] sm:$0xff]
      %v1872 = vld [vmem:[%s1868 + $0x18] sm:$0xff]
      %v1873 = vld [vmem:[%s4 + $0x7] sm:$0x1]
      %v1874 = vlaneseq
      %v1875 = vshrl.u32 %v1874, 7
      %v1876 = vsub.s32 0, %v1875
      %v1877 = vrot.slane %v1873, %v1876
      %v1879 = vsel %vm342, %v1865, 0
      %1881 = vmatprep.subr.mxu0 0.0
      %1882 = vmatpush1.msra.mxu0 %v1869
      %1883 = vmatprep.subr.mxu0 0.0
      %1884 = vmatpush1.msra.mxu0 %v1870
      %1885 = vmatprep.subr.mxu0 0.0
      %1886 = vmatpush1.msra.mxu0 %v1871
      %1887 = vmatprep.subr.mxu0 0.0
      %1888 = vmatpush1.msra.mxu0 %v1872
      %1889 = vmatprep.subr.mxu0 0.0
      %1890 = vmatpush1.msra.mxu0 0.0
      %1891 = vmatprep.subr.mxu0 0.0
      %1892 = vmatpush1.msra.mxu0 0.0
      %1893 = vmatprep.subr.mxu0 0.0
      %1894 = vmatpush1.msra.mxu0 0.0
      %1895 = vmatprep.subr.mxu0 0.0
      %1896 = vmatpush1.msra.mxu0 0.0
      %1897 = vmatprep.subr.mxu0 0.0
      %1898 = vmatpush1.msra.mxu0 0.0
      %1899 = vmatprep.subr.mxu0 0.0
      %1900 = vmatpush1.msra.mxu0 0.0
      %1901 = vmatprep.subr.mxu0 0.0
      %1902 = vmatpush1.msra.mxu0 0.0
      %1903 = vmatprep.subr.mxu0 0.0
      %1904 = vmatpush1.msra.mxu0 0.0
      %1905 = vmatprep.subr.mxu0 0.0
      %1906 = vmatpush1.msra.mxu0 0.0
      %1907 = vmatprep.subr.mxu0 0.0
      %1908 = vmatpush1.msra.mxu0 0.0
      %1909 = vmatprep.subr.mxu0 0.0
      %1910 = vmatpush1.msra.mxu0 0.0
      %1911 = vmatprep.subr.mxu0 0.0
      %1912 = vmatpush1.msra.mxu0 0.0
      %1913 = vmatprep.subr.mxu0 0.0
      %1914 = vmatpush1.msra.mxu0 0.0
      %1915 = vmatprep.subr.mxu0 0.0
      %1916 = vmatpush1.msra.mxu0 0.0
      %1917 = vmatprep.subr.mxu0 0.0
      %1918 = vmatpush1.msra.mxu0 0.0
      %1919 = vmatprep.subr.mxu0 0.0
      %1920 = vmatpush1.msra.mxu0 0.0
      %1921 = vmatprep.subr.mxu0 0.0
      %1922 = vmatpush1.msra.mxu0 0.0
      %1923 = vmatprep.subr.mxu0 0.0
      %1924 = vmatpush1.msra.mxu0 0.0
      %1925 = vmatprep.subr.mxu0 0.0
      %1926 = vmatpush1.msra.mxu0 0.0
      %1927 = vmatprep.subr.mxu0 0.0
      %1928 = vmatpush1.msra.mxu0 0.0
      %1929 = vmatprep.subr.mxu0 0.0
      %1930 = vmatpush1.msra.mxu0 0.0
      %1931 = vmatprep.subr.mxu0 0.0
      %1932 = vmatpush1.msra.mxu0 0.0
      %1933 = vmatprep.subr.mxu0 0.0
      %1934 = vmatpush1.msra.mxu0 0.0
      %1935 = vmatprep.subr.mxu0 0.0
      %1936 = vmatpush1.msra.mxu0 0.0
      %1937 = vmatprep.subr.mxu0 0.0
      %1938 = vmatpush1.msra.mxu0 0.0
      %1939 = vmatprep.subr.mxu0 0.0
      %1940 = vmatpush1.msra.mxu0 0.0
      %1941 = vmatprep.subr.mxu0 0.0
      %1942 = vmatpush1.msra.mxu0 0.0
      %1943 = vmatprep.subr.mxu0 0.0
      %1944 = vmatpush1.msra.mxu0 0.0
      %1945 = vmatprep.mubr.f32.mxu0 0.0
      %1946 = vmatmul.mubr.f32.gmra.mrb[0].mxu0 %v1879
      %v1947 = vpop.f32.mrb[0].mxu0
      %v1948 = vadd.f32 %v1877, %v1947
      %v1949 = vpop.f32.mrb[0].mxu0
      %1950 = vdwg.mxu0
      %v1951 = vmax.f32 %v1948, 0.0
      %v1952 = vld [vmem:[%s5] sm:$0xff]
      %v1953 = vld [vmem:[%s5 + $0x8] sm:$0xff]
      %v1954 = vld [vmem:[%s5 + $0x10] sm:$0xff]
      %v1955 = vld [vmem:[%s5 + $0x18] sm:$0xff]
      %v1956 = vld [vmem:[%s6] sm:$0x1]
      %v1958 = vlaneseq
      %v1959 = vshrl.u32 %v1958, 7
      %v1960 = vsub.s32 0, %v1959
      %v1961 = vrot.slane %v1956, %v1960
      %v1964 = vsel %vm342, %v1951, 0
      %1966 = vmatprep.subr.mxu0 0.0
      %1967 = vmatpush1.msra.mxu0 %v1952
      %1968 = vmatprep.subr.mxu0 0.0
      %1969 = vmatpush1.msra.mxu0 %v1953
      %1970 = vmatprep.subr.mxu0 0.0
      %1971 = vmatpush1.msra.mxu0 %v1954
      %1972 = vmatprep.subr.mxu0 0.0
      %1973 = vmatpush1.msra.mxu0 %v1955
      %1974 = vmatprep.subr.mxu0 0.0
      %1975 = vmatpush1.msra.mxu0 0.0
      %1976 = vmatprep.subr.mxu0 0.0
      %1977 = vmatpush1.msra.mxu0 0.0
      %1978 = vmatprep.subr.mxu0 0.0
      %1979 = vmatpush1.msra.mxu0 0.0
      %1980 = vmatprep.subr.mxu0 0.0
      %1981 = vmatpush1.msra.mxu0 0.0
      %1982 = vmatprep.subr.mxu0 0.0
      %1983 = vmatpush1.msra.mxu0 0.0
      %1984 = vmatprep.subr.mxu0 0.0
      %1985 = vmatpush1.msra.mxu0 0.0
      %1986 = vmatprep.subr.mxu0 0.0
      %1987 = vmatpush1.msra.mxu0 0.0
      %1988 = vmatprep.subr.mxu0 0.0
      %1989 = vmatpush1.msra.mxu0 0.0
      %1990 = vmatprep.subr.mxu0 0.0
      %1991 = vmatpush1.msra.mxu0 0.0
      %1992 = vmatprep.subr.mxu0 0.0
      %1993 = vmatpush1.msra.mxu0 0.0
      %1994 = vmatprep.subr.mxu0 0.0
      %1995 = vmatpush1.msra.mxu0 0.0
      %1996 = vmatprep.subr.mxu0 0.0
      %1997 = vmatpush1.msra.mxu0 0.0
      %1998 = vmatprep.subr.mxu0 0.0
      %1999 = vmatpush1.msra.mxu0 0.0
      %2000 = vmatprep.subr.mxu0 0.0
      %2001 = vmatpush1.msra.mxu0 0.0
      %2002 = vmatprep.subr.mxu0 0.0
      %2003 = vmatpush1.msra.mxu0 0.0
      %2004 = vmatprep.subr.mxu0 0.0
      %2005 = vmatpush1.msra.mxu0 0.0
      %2006 = vmatprep.subr.mxu0 0.0
      %2007 = vmatpush1.msra.mxu0 0.0
      %2008 = vmatprep.subr.mxu0 0.0
      %2009 = vmatpush1.msra.mxu0 0.0
      %2010 = vmatprep.subr.mxu0 0.0
      %2011 = vmatpush1.msra.mxu0 0.0
      %2012 = vmatprep.subr.mxu0 0.0
      %2013 = vmatpush1.msra.mxu0 0.0
      %2014 = vmatprep.subr.mxu0 0.0
      %2015 = vmatpush1.msra.mxu0 0.0
      %2016 = vmatprep.subr.mxu0 0.0
      %2017 = vmatpush1.msra.mxu0 0.0
      %2018 = vmatprep.subr.mxu0 0.0
      %2019 = vmatpush1.msra.mxu0 0.0
      %2020 = vmatprep.subr.mxu0 0.0
      %2021 = vmatpush1.msra.mxu0 0.0
      %2022 = vmatprep.subr.mxu0 0.0
      %2023 = vmatpush1.msra.mxu0 0.0
      %2024 = vmatprep.subr.mxu0 0.0
      %2025 = vmatpush1.msra.mxu0 0.0
      %2026 = vmatprep.subr.mxu0 0.0
      %2027 = vmatpush1.msra.mxu0 0.0
      %2028 = vmatprep.subr.mxu0 0.0
      %2029 = vmatpush1.msra.mxu0 0.0
      %2030 = vmatprep.mubr.f32.mxu0 0.0
      %2031 = vmatmul.mubr.f32.gmra.mrb[0].mxu0 %v1964
      %v2032 = vpop.f32.mrb[0].mxu0
      %v2033 = vadd.f32 %v1961, %v2032
      %v2034 = vpop.f32.mrb[0].mxu0
      %2035 = vdwg.mxu0
      %2036 = vst [vmem:[%s300] sm:$0xff] %v2033
      %p2037 = scmp.lt.s32.totalorder %s18, 1
      %s2038 = scalar_select %p2037, %s18, 1
      %s2039 = smul.addr %s2038, 8
      %s2040 = scalar_lea.vmem %s7, %s2039
      // Predicated region
      $region49: #{tspn_forward.1} parent=47 // pred_check
        %p2041 = pneg %p193
      $region50: #{tspn_forward.1} parent=47 // pred_check_branch
        %2043 = sbr.rel (%p2041) target = $region52
      $region51: #{tspn_forward.1} parent=47 // pred_region
        _
      $region52: #{tspn_forward.1} parent=47 // pred_fallthru
        _
    $region48: #{tspn_forward.1} parent=5 // pred_fallthru
      _
    %p2044 = scmp.le.s32.totalorder 2, %s13
    // Predicated region
    $region53: #{tspn_forward.1} parent=5 // pred_check
      %p2045 = pneg %p2044
    $region54: #{tspn_forward.1} parent=5 // pred_check_branch
      %2047 = sbr.rel (%p2045) target = $region56
    $region55: #{tspn_forward.1} parent=5 // pred_region
      %s2048 = ssub.s32 %s13, 2
      // Predicated region
      $region57: #{tspn_forward.1} parent=55 // pred_check
        %p2049 = pneg %p199
      $region58: #{tspn_forward.1} parent=55 // pred_check_branch
        %2051 = sbr.rel (%p2049) target = $region60
      $region59: #{tspn_forward.1} parent=55 // pred_region
        %p2052 = scmp.lt.s32.totalorder %s19, 1
        %s2053 = scalar_select %p2052, %s19, 1
        %s2054 = smul.addr %s2053, 8
        %s2055 = scalar_lea.vmem %s7, %s2054
      $region60: #{tspn_forward.1} parent=55 // pred_fallthru
        _
    $region56: #{tspn_forward.1} parent=5 // pred_fallthru
      _
  $region6: #{tspn_forward.1} parent=0 // loop_footer
    %s17 = sadd.s32 1, %s13
  $region7: #{tspn_forward.1} parent=0 // loop_footer_branch
    %12 = sbr.rel target = $region3
  $region8: #{tspn_forward.1} parent=0 // loop_exit
    _

</llo_original>
